<compile_context>
chip_gen: v7x
topology: tpu7x:2x2x1
jax: 0.10.0
libtpu: 0.0.40
codegen_flags: <defaults>
</compile_context>

<pallas_src>
import functools

import jax
import jax.numpy as jnp
from jax.experimental import pallas as pl
from jax.experimental.pallas import tpu as pltpu


# ----------------------------------------------------------------------------
# Fused Set2Set kernel: n_iters x (LSTM step + per-graph attention readout).
# ----------------------------------------------------------------------------
def _set2set_kernel(feat_ref, mask_ref, *rest, n_iters, n_layers, D):
    # feat_ref: (B, N, D)   padded node features (VMEM resident, loaded once)
    # mask_ref: (B, 1, N)   1.0 for valid nodes, 0.0 for padding
    # rest    : w_0, b_0, ..., w_{L-1}, b_{L-1}, out_ref
    #   w_l : (in_l + D, 4D) merged [W_ih; W_hh]^T, in_0 = 2D, in_{l>0} = D
    #   b_l : (1, 4D)        b_ih + b_hh
    # out_ref : (B, 2D)      final q_star
    out_ref = rest[-1]
    param_refs = rest[:-1]

    feat = feat_ref[...]                                   # (B, N, D)
    mask = mask_ref[...]                                   # (B, 1, N)
    B = feat.shape[0]

    q_star = jnp.zeros((B, 2 * D), jnp.float32)
    h = [jnp.zeros((B, D), jnp.float32) for _ in range(n_layers)]
    c = [jnp.zeros((B, D), jnp.float32) for _ in range(n_layers)]

    neg_big = jnp.float32(-1e30)                           # f32-safe mask value
    eps = jnp.float32(1e-20)

    for _ in range(n_iters):                               # static unroll
        # ---- multi-layer LSTM cell step (one merged matmul per layer) ------
        x = q_star                                         # (B, 2D)
        for l in range(n_layers):                          # static unroll
            w = param_refs[2 * l][...]                     # (in_l + D, 4D)
            b = param_refs[2 * l + 1][...]                 # (1, 4D)
            xh = jnp.concatenate([x, h[l]], axis=-1)       # (B, in_l + D)
            gates = jnp.dot(xh, w,
                            preferred_element_type=jnp.float32) + b
            i_g = jax.nn.sigmoid(gates[:, 0:D])
            f_g = jax.nn.sigmoid(gates[:, D:2 * D])
            g_g = jnp.tanh(gates[:, 2 * D:3 * D])
            o_g = jax.nn.sigmoid(gates[:, 3 * D:4 * D])
            c[l] = f_g * c[l] + i_g * g_g
            h[l] = o_g * jnp.tanh(c[l])
            x = h[l]                                       # input to next layer
        q = x                                              # (B, D)

        # ---- batched per-graph attention readout (nodes on the lane axis) --
        # e[b, 0, n] = <feat[b, n, :], q[b, :]>   -> MXU
        e = jnp.einsum('bkd,bnd->bkn', q[:, None, :], feat,
                       preferred_element_type=jnp.float32)          # (B,1,N)
        e = jnp.where(mask > 0, e, neg_big)
        m = jnp.max(e, axis=-1, keepdims=True)                      # (B,1,1)
        p = jnp.exp(e - m) * mask                                    # (B,1,N)
        denom = jnp.sum(p, axis=-1, keepdims=True) + eps             # (B,1,1)
        alpha = p * pl.reciprocal(denom, approx=True)                # softmax
        # r[b, :] = sum_n alpha[b, n] * feat[b, n, :]   -> MXU
        r = jnp.einsum('bkn,bnd->bkd', alpha, feat,
                       preferred_element_type=jnp.float32)[:, 0, :]  # (B, D)

        q_star = jnp.concatenate([q, r], axis=-1)                    # (B, 2D)

    out_ref[...] = q_star                                  # single dense store


# ----------------------------------------------------------------------------
# Set2SetReadOut wrapper (field='node_feat').
# ----------------------------------------------------------------------------
class Set2SetReadOutPallas:
    def __init__(self, in_feats, n_iters, n_layers, key):
        self.in_feats = in_feats
        self.n_iters = n_iters
        self.n_layers = n_layers
        D = in_feats
        k = 1.0 / jnp.sqrt(jnp.float32(D))
        params = []
        for l in range(n_layers):
            key, k1, k2, k3, k4 = jax.random.split(key, 5)
            in_dim = 2 * D if l == 0 else D                # torch.nn.LSTM dims
            w_ih = jax.random.uniform(k1, (4 * D, in_dim), jnp.float32, -k, k)
            w_hh = jax.random.uniform(k2, (4 * D, D), jnp.float32, -k, k)
            b_ih = jax.random.uniform(k3, (4 * D,), jnp.float32, -k, k)
            b_hh = jax.random.uniform(k4, (4 * D,), jnp.float32, -k, k)
            # merged weight for one dot([x, h_prev], w): (in_dim + D, 4D)
            w_merged = jnp.concatenate([w_ih.T, w_hh.T], axis=0)
            b_merged = (b_ih + b_hh)[None, :]              # (1, 4D)
            params.append((w_merged, b_merged))
        self.params = params

    @functools.partial(jax.jit, static_argnums=0)
    def __call__(self, feat, mask):
        # feat: (B, N, D) padded node features; mask: (B, 1, N) validity mask
        B, N, D = feat.shape
        flat_params = [a for wb in self.params for a in wb]
        kernel = functools.partial(_set2set_kernel,
                                   n_iters=self.n_iters,
                                   n_layers=self.n_layers,
                                   D=D)
        vmem = pl.BlockSpec(memory_space=pltpu.MemorySpace.VMEM)
        return pl.pallas_call(
            kernel,
            out_shape=jax.ShapeDtypeStruct((B, 2 * D), jnp.float32),
            in_specs=[vmem] * (2 + len(flat_params)),
            out_specs=vmem,
        )(feat, mask, *flat_params)


# ----------------------------------------------------------------------------
# Pure-JAX reference (same math, exact division) for a correctness check.
# ----------------------------------------------------------------------------
def set2set_reference(feat, node_mask, params, n_iters, n_layers):
    B, N, D = feat.shape
    q_star = jnp.zeros((B, 2 * D), jnp.float32)
    h = [jnp.zeros((B, D), jnp.float32) for _ in range(n_layers)]
    c = [jnp.zeros((B, D), jnp.float32) for _ in range(n_layers)]
    for _ in range(n_iters):
        x = q_star
        for l in range(n_layers):
            w, b = params[l]
            gates = jnp.concatenate([x, h[l]], -1) @ w + b
            i_g = jax.nn.sigmoid(gates[:, :D])
            f_g = jax.nn.sigmoid(gates[:, D:2 * D])
            g_g = jnp.tanh(gates[:, 2 * D:3 * D])
            o_g = jax.nn.sigmoid(gates[:, 3 * D:4 * D])
            c[l] = f_g * c[l] + i_g * g_g
            h[l] = o_g * jnp.tanh(c[l])
            x = h[l]
        q = x
        e = jnp.einsum('bnd,bd->bn', feat, q)
        e = jnp.where(node_mask > 0, e, -1e30)
        e = e - jnp.max(e, axis=-1, keepdims=True)
        p = jnp.exp(e) * node_mask
        alpha = p / jnp.maximum(jnp.sum(p, axis=-1, keepdims=True), 1e-20)
        r = jnp.einsum('bn,bnd->bd', alpha, feat)
        q_star = jnp.concatenate([q, r], axis=-1)
    return q_star


if __name__ == "__main__":
    key = jax.random.PRNGKey(0)
    in_feats = 32       # D
    n_iters = 3
    n_layers = 1
    B = 2               # number of graphs in the batch
    N = 16              # max nodes per graph (padded)

    key, kf, kw = jax.random.split(key, 3)
    feat = jax.random.normal(kf, (B, N, in_feats), jnp.float32)
    # variable graph sizes: graph 0 has 16 nodes, graph 1 has 11
    n_nodes = jnp.array([16, 11], jnp.int32)
    node_mask = (jnp.arange(N)[None, :] < n_nodes[:, None]).astype(jnp.float32)
    feat = feat * node_mask[..., None]          # zero padded rows (harmless)
    mask = node_mask[:, None, :]                # (B, 1, N): nodes on lanes

    model = Set2SetReadOutPallas(in_feats, n_iters, n_layers, kw)
    out = jax.block_until_ready(model(feat, mask))

    assert out.shape == (B, 2 * in_feats)
    assert bool(jnp.all(jnp.isfinite(out)))

    ref = set2set_reference(feat, node_mask, model.params, n_iters, n_layers)
    max_err = float(jnp.max(jnp.abs(out - ref)))
    assert max_err < 2e-2, f"max abs err {max_err}"

    print("KERNEL_OK")
</pallas_src>

<mosaic_0001>
module attributes {stable_mosaic.version = 11 : i64} {
  func.func @_set2set_kernel(%arg0: memref<2x16x32xf32, #tpu.memory_space<vmem>>, %arg1: memref<2x1x16xf32, #tpu.memory_space<vmem>>, %arg2: memref<96x128xf32, #tpu.memory_space<vmem>>, %arg3: memref<1x128xf32, #tpu.memory_space<vmem>>, %arg4: memref<2x64xf32, #tpu.memory_space<vmem>>) attributes {dimension_semantics = [], scalar_prefetch = 0 : i64, scratch_operands = 0 : i64, tpu.core_type = #tpu.core_type<tc>} {
    %c0 = arith.constant 0 : index
    %c0_0 = arith.constant 0 : index
    %c0_1 = arith.constant 0 : index
    %0 = vector.load %arg0[%c0, %c0_0, %c0_1] : memref<2x16x32xf32, #tpu.memory_space<vmem>>, vector<2x16x32xf32>
    %c0_2 = arith.constant 0 : index
    %c0_3 = arith.constant 0 : index
    %c0_4 = arith.constant 0 : index
    %1 = vector.load %arg1[%c0_2, %c0_3, %c0_4] : memref<2x1x16xf32, #tpu.memory_space<vmem>>, vector<2x1x16xf32>
    %cst = arith.constant 0.000000e+00 : f32
    %2 = vector.broadcast %cst : f32 to vector<2x64xf32>
    %cst_5 = arith.constant 0.000000e+00 : f32
    %3 = vector.broadcast %cst_5 : f32 to vector<2x32xf32>
    %cst_6 = arith.constant 0.000000e+00 : f32
    %4 = vector.broadcast %cst_6 : f32 to vector<2x32xf32>
    %c0_7 = arith.constant 0 : index
    %c0_8 = arith.constant 0 : index
    %5 = vector.load %arg2[%c0_7, %c0_8] : memref<96x128xf32, #tpu.memory_space<vmem>>, vector<96x128xf32>
    %c0_9 = arith.constant 0 : index
    %c0_10 = arith.constant 0 : index
    %6 = vector.load %arg3[%c0_9, %c0_10] : memref<1x128xf32, #tpu.memory_space<vmem>>, vector<1x128xf32>
    %7 = tpu.concatenate %2, %3 in 1 : vector<2x64xf32>, vector<2x32xf32> -> vector<2x96xf32>
    %cst_11 = arith.constant dense<0.000000e+00> : vector<2x128xf32>
    %8 = tpu.matmul %7, %5, %cst_11 {dimension_numbers = #tpu.dot_dimension_numbers<[1], [0], [0], [1], [0, 0, 1, 1], [], []>} : vector<2x96xf32>, vector<96x128xf32>, vector<2x128xf32> -> vector<2x128xf32>
    %9 = vector.broadcast %6 : vector<1x128xf32> to vector<2x128xf32>
    %10 = arith.addf %8, %9 : vector<2x128xf32>
    %11 = vector.extract_strided_slice %10 {offsets = [0, 0], sizes = [2, 32], strides = [1, 1]} : vector<2x128xf32> to vector<2x32xf32>
    %12 = arith.negf %11 : vector<2x32xf32>
    %13 = math.exp %12 : vector<2x32xf32>
    %cst_12 = arith.constant 1.000000e+00 : f32
    %14 = vector.broadcast %cst_12 : f32 to vector<2x32xf32>
    %15 = arith.addf %14, %13 : vector<2x32xf32>
    %16 = arith.divf %14, %15 : vector<2x32xf32>
    %17 = vector.extract_strided_slice %10 {offsets = [0, 32], sizes = [2, 32], strides = [1, 1]} : vector<2x128xf32> to vector<2x32xf32>
    %18 = arith.negf %17 : vector<2x32xf32>
    %19 = math.exp %18 : vector<2x32xf32>
    %cst_13 = arith.constant 1.000000e+00 : f32
    %20 = vector.broadcast %cst_13 : f32 to vector<2x32xf32>
    %21 = arith.addf %20, %19 : vector<2x32xf32>
    %22 = arith.divf %20, %21 : vector<2x32xf32>
    %23 = vector.extract_strided_slice %10 {offsets = [0, 64], sizes = [2, 32], strides = [1, 1]} : vector<2x128xf32> to vector<2x32xf32>
    %24 = math.tanh %23 : vector<2x32xf32>
    %25 = vector.extract_strided_slice %10 {offsets = [0, 96], sizes = [2, 32], strides = [1, 1]} : vector<2x128xf32> to vector<2x32xf32>
    %26 = arith.negf %25 : vector<2x32xf32>
    %27 = math.exp %26 : vector<2x32xf32>
    %cst_14 = arith.constant 1.000000e+00 : f32
    %28 = vector.broadcast %cst_14 : f32 to vector<2x32xf32>
    %29 = arith.addf %28, %27 : vector<2x32xf32>
    %30 = arith.divf %28, %29 : vector<2x32xf32>
    %31 = arith.mulf %22, %4 : vector<2x32xf32>
    %32 = arith.mulf %16, %24 : vector<2x32xf32>
    %33 = arith.addf %31, %32 : vector<2x32xf32>
    %34 = math.tanh %33 : vector<2x32xf32>
    %35 = arith.mulf %30, %34 : vector<2x32xf32>
    %36 = vector.shape_cast %35 : vector<2x32xf32> to vector<2x1x32xf32>
    "tpu.trace_start"() <{level = 10 : i32, message = "bkd,bnd->bkn"}> : () -> ()
    %cst_15 = arith.constant dense<0.000000e+00> : vector<2x1x16xf32>
    %37 = tpu.matmul %36, %0, %cst_15 {dimension_numbers = #tpu.dot_dimension_numbers<[2], [2], [1], [1], [0, 0, 0, 1, 1, 1], [0], [0]>} : vector<2x1x32xf32>, vector<2x16x32xf32>, vector<2x1x16xf32> -> vector<2x1x16xf32>
    %cst_16 = arith.constant 0.000000e+00 : f32
    "tpu.trace_stop"() : () -> ()
    %38 = vector.broadcast %cst_16 : f32 to vector<2x1x16xf32>
    %39 = arith.cmpf ogt, %1, %38 : vector<2x1x16xf32>
    %cst_17 = arith.constant -1.000000e+30 : f32
    %40 = vector.broadcast %cst_17 : f32 to vector<2x1x16xf32>
    %41 = arith.select %39, %37, %40 : vector<2x1x16xi1>, vector<2x1x16xf32>
    %cst_18 = arith.constant dense<0xFF800000> : vector<2x1xf32>
    %42 = vector.multi_reduction <maximumf>, %41, %cst_18 [2] : vector<2x1x16xf32> to vector<2x1xf32>
    %43 = vector.shape_cast %42 : vector<2x1xf32> to vector<2x1x1xf32>
    %44 = vector.broadcast %43 : vector<2x1x1xf32> to vector<2x1x16xf32>
    %45 = arith.subf %41, %44 : vector<2x1x16xf32>
    %46 = math.exp %45 : vector<2x1x16xf32>
    %47 = arith.mulf %46, %1 : vector<2x1x16xf32>
    %cst_19 = arith.constant dense<0.000000e+00> : vector<2x1xf32>
    %48 = vector.multi_reduction <add>, %47, %cst_19 [2] : vector<2x1x16xf32> to vector<2x1xf32>
    %49 = vector.shape_cast %48 : vector<2x1xf32> to vector<2x1x1xf32>
    %cst_20 = arith.constant 9.99999968E-21 : f32
    %50 = vector.broadcast %cst_20 : f32 to vector<2x1x1xf32>
    %51 = arith.addf %49, %50 : vector<2x1x1xf32>
    %52 = tpu.reciprocal %51 {approx = true} : vector<2x1x1xf32> -> vector<2x1x1xf32>
    %53 = vector.broadcast %52 : vector<2x1x1xf32> to vector<2x1x16xf32>
    %54 = arith.mulf %47, %53 : vector<2x1x16xf32>
    "tpu.trace_start"() <{level = 10 : i32, message = "bkn,bnd->bkd"}> : () -> ()
    %cst_21 = arith.constant dense<0.000000e+00> : vector<2x1x32xf32>
    %55 = tpu.matmul %54, %0, %cst_21 {dimension_numbers = #tpu.dot_dimension_numbers<[2], [1], [1], [2], [0, 0, 0, 1, 1, 2], [0], [0]>} : vector<2x1x16xf32>, vector<2x16x32xf32>, vector<2x1x32xf32> -> vector<2x1x32xf32>
    "tpu.trace_stop"() : () -> ()
    %56 = vector.shape_cast %55 : vector<2x1x32xf32> to vector<2x32xf32>
    %57 = tpu.concatenate %35, %56 in 1 : vector<2x32xf32>, vector<2x32xf32> -> vector<2x64xf32>
    %c0_22 = arith.constant 0 : index
    %c0_23 = arith.constant 0 : index
    %58 = vector.load %arg2[%c0_22, %c0_23] : memref<96x128xf32, #tpu.memory_space<vmem>>, vector<96x128xf32>
    %c0_24 = arith.constant 0 : index
    %c0_25 = arith.constant 0 : index
    %59 = vector.load %arg3[%c0_24, %c0_25] : memref<1x128xf32, #tpu.memory_space<vmem>>, vector<1x128xf32>
    %60 = tpu.concatenate %57, %35 in 1 : vector<2x64xf32>, vector<2x32xf32> -> vector<2x96xf32>
    %cst_26 = arith.constant dense<0.000000e+00> : vector<2x128xf32>
    %61 = tpu.matmul %60, %58, %cst_26 {dimension_numbers = #tpu.dot_dimension_numbers<[1], [0], [0], [1], [0, 0, 1, 1], [], []>} : vector<2x96xf32>, vector<96x128xf32>, vector<2x128xf32> -> vector<2x128xf32>
    %62 = vector.broadcast %59 : vector<1x128xf32> to vector<2x128xf32>
    %63 = arith.addf %61, %62 : vector<2x128xf32>
    %64 = vector.extract_strided_slice %63 {offsets = [0, 0], sizes = [2, 32], strides = [1, 1]} : vector<2x128xf32> to vector<2x32xf32>
    %65 = arith.negf %64 : vector<2x32xf32>
    %66 = math.exp %65 : vector<2x32xf32>
    %cst_27 = arith.constant 1.000000e+00 : f32
    %67 = vector.broadcast %cst_27 : f32 to vector<2x32xf32>
    %68 = arith.addf %67, %66 : vector<2x32xf32>
    %69 = arith.divf %67, %68 : vector<2x32xf32>
    %70 = vector.extract_strided_slice %63 {offsets = [0, 32], sizes = [2, 32], strides = [1, 1]} : vector<2x128xf32> to vector<2x32xf32>
    %71 = arith.negf %70 : vector<2x32xf32>
    %72 = math.exp %71 : vector<2x32xf32>
    %cst_28 = arith.constant 1.000000e+00 : f32
    %73 = vector.broadcast %cst_28 : f32 to vector<2x32xf32>
    %74 = arith.addf %73, %72 : vector<2x32xf32>
    %75 = arith.divf %73, %74 : vector<2x32xf32>
    %76 = vector.extract_strided_slice %63 {offsets = [0, 64], sizes = [2, 32], strides = [1, 1]} : vector<2x128xf32> to vector<2x32xf32>
    %77 = math.tanh %76 : vector<2x32xf32>
    %78 = vector.extract_strided_slice %63 {offsets = [0, 96], sizes = [2, 32], strides = [1, 1]} : vector<2x128xf32> to vector<2x32xf32>
    %79 = arith.negf %78 : vector<2x32xf32>
    %80 = math.exp %79 : vector<2x32xf32>
    %cst_29 = arith.constant 1.000000e+00 : f32
    %81 = vector.broadcast %cst_29 : f32 to vector<2x32xf32>
    %82 = arith.addf %81, %80 : vector<2x32xf32>
    %83 = arith.divf %81, %82 : vector<2x32xf32>
    %84 = arith.mulf %75, %33 : vector<2x32xf32>
    %85 = arith.mulf %69, %77 : vector<2x32xf32>
    %86 = arith.addf %84, %85 : vector<2x32xf32>
    %87 = math.tanh %86 : vector<2x32xf32>
    %88 = arith.mulf %83, %87 : vector<2x32xf32>
    %89 = vector.shape_cast %88 : vector<2x32xf32> to vector<2x1x32xf32>
    "tpu.trace_start"() <{level = 10 : i32, message = "bkd,bnd->bkn"}> : () -> ()
    %cst_30 = arith.constant dense<0.000000e+00> : vector<2x1x16xf32>
    %90 = tpu.matmul %89, %0, %cst_30 {dimension_numbers = #tpu.dot_dimension_numbers<[2], [2], [1], [1], [0, 0, 0, 1, 1, 1], [0], [0]>} : vector<2x1x32xf32>, vector<2x16x32xf32>, vector<2x1x16xf32> -> vector<2x1x16xf32>
    %cst_31 = arith.constant 0.000000e+00 : f32
    "tpu.trace_stop"() : () -> ()
    %91 = vector.broadcast %cst_31 : f32 to vector<2x1x16xf32>
    %92 = arith.cmpf ogt, %1, %91 : vector<2x1x16xf32>
    %cst_32 = arith.constant -1.000000e+30 : f32
    %93 = vector.broadcast %cst_32 : f32 to vector<2x1x16xf32>
    %94 = arith.select %92, %90, %93 : vector<2x1x16xi1>, vector<2x1x16xf32>
    %cst_33 = arith.constant dense<0xFF800000> : vector<2x1xf32>
    %95 = vector.multi_reduction <maximumf>, %94, %cst_33 [2] : vector<2x1x16xf32> to vector<2x1xf32>
    %96 = vector.shape_cast %95 : vector<2x1xf32> to vector<2x1x1xf32>
    %97 = vector.broadcast %96 : vector<2x1x1xf32> to vector<2x1x16xf32>
    %98 = arith.subf %94, %97 : vector<2x1x16xf32>
    %99 = math.exp %98 : vector<2x1x16xf32>
    %100 = arith.mulf %99, %1 : vector<2x1x16xf32>
    %cst_34 = arith.constant dense<0.000000e+00> : vector<2x1xf32>
    %101 = vector.multi_reduction <add>, %100, %cst_34 [2] : vector<2x1x16xf32> to vector<2x1xf32>
    %102 = vector.shape_cast %101 : vector<2x1xf32> to vector<2x1x1xf32>
    %cst_35 = arith.constant 9.99999968E-21 : f32
    %103 = vector.broadcast %cst_35 : f32 to vector<2x1x1xf32>
    %104 = arith.addf %102, %103 : vector<2x1x1xf32>
    %105 = tpu.reciprocal %104 {approx = true} : vector<2x1x1xf32> -> vector<2x1x1xf32>
    %106 = vector.broadcast %105 : vector<2x1x1xf32> to vector<2x1x16xf32>
    %107 = arith.mulf %100, %106 : vector<2x1x16xf32>
    "tpu.trace_start"() <{level = 10 : i32, message = "bkn,bnd->bkd"}> : () -> ()
    %cst_36 = arith.constant dense<0.000000e+00> : vector<2x1x32xf32>
    %108 = tpu.matmul %107, %0, %cst_36 {dimension_numbers = #tpu.dot_dimension_numbers<[2], [1], [1], [2], [0, 0, 0, 1, 1, 2], [0], [0]>} : vector<2x1x16xf32>, vector<2x16x32xf32>, vector<2x1x32xf32> -> vector<2x1x32xf32>
    "tpu.trace_stop"() : () -> ()
    %109 = vector.shape_cast %108 : vector<2x1x32xf32> to vector<2x32xf32>
    %110 = tpu.concatenate %88, %109 in 1 : vector<2x32xf32>, vector<2x32xf32> -> vector<2x64xf32>
    %c0_37 = arith.constant 0 : index
    %c0_38 = arith.constant 0 : index
    %111 = vector.load %arg2[%c0_37, %c0_38] : memref<96x128xf32, #tpu.memory_space<vmem>>, vector<96x128xf32>
    %c0_39 = arith.constant 0 : index
    %c0_40 = arith.constant 0 : index
    %112 = vector.load %arg3[%c0_39, %c0_40] : memref<1x128xf32, #tpu.memory_space<vmem>>, vector<1x128xf32>
    %113 = tpu.concatenate %110, %88 in 1 : vector<2x64xf32>, vector<2x32xf32> -> vector<2x96xf32>
    %cst_41 = arith.constant dense<0.000000e+00> : vector<2x128xf32>
    %114 = tpu.matmul %113, %111, %cst_41 {dimension_numbers = #tpu.dot_dimension_numbers<[1], [0], [0], [1], [0, 0, 1, 1], [], []>} : vector<2x96xf32>, vector<96x128xf32>, vector<2x128xf32> -> vector<2x128xf32>
    %115 = vector.broadcast %112 : vector<1x128xf32> to vector<2x128xf32>
    %116 = arith.addf %114, %115 : vector<2x128xf32>
    %117 = vector.extract_strided_slice %116 {offsets = [0, 0], sizes = [2, 32], strides = [1, 1]} : vector<2x128xf32> to vector<2x32xf32>
    %118 = arith.negf %117 : vector<2x32xf32>
    %119 = math.exp %118 : vector<2x32xf32>
    %cst_42 = arith.constant 1.000000e+00 : f32
    %120 = vector.broadcast %cst_42 : f32 to vector<2x32xf32>
    %121 = arith.addf %120, %119 : vector<2x32xf32>
    %122 = arith.divf %120, %121 : vector<2x32xf32>
    %123 = vector.extract_strided_slice %116 {offsets = [0, 32], sizes = [2, 32], strides = [1, 1]} : vector<2x128xf32> to vector<2x32xf32>
    %124 = arith.negf %123 : vector<2x32xf32>
    %125 = math.exp %124 : vector<2x32xf32>
    %cst_43 = arith.constant 1.000000e+00 : f32
    %126 = vector.broadcast %cst_43 : f32 to vector<2x32xf32>
    %127 = arith.addf %126, %125 : vector<2x32xf32>
    %128 = arith.divf %126, %127 : vector<2x32xf32>
    %129 = vector.extract_strided_slice %116 {offsets = [0, 64], sizes = [2, 32], strides = [1, 1]} : vector<2x128xf32> to vector<2x32xf32>
    %130 = math.tanh %129 : vector<2x32xf32>
    %131 = vector.extract_strided_slice %116 {offsets = [0, 96], sizes = [2, 32], strides = [1, 1]} : vector<2x128xf32> to vector<2x32xf32>
    %132 = arith.negf %131 : vector<2x32xf32>
    %133 = math.exp %132 : vector<2x32xf32>
    %cst_44 = arith.constant 1.000000e+00 : f32
    %134 = vector.broadcast %cst_44 : f32 to vector<2x32xf32>
    %135 = arith.addf %134, %133 : vector<2x32xf32>
    %136 = arith.divf %134, %135 : vector<2x32xf32>
    %137 = arith.mulf %128, %86 : vector<2x32xf32>
    %138 = arith.mulf %122, %130 : vector<2x32xf32>
    %139 = arith.addf %137, %138 : vector<2x32xf32>
    %140 = math.tanh %139 : vector<2x32xf32>
    %141 = arith.mulf %136, %140 : vector<2x32xf32>
    %142 = vector.shape_cast %141 : vector<2x32xf32> to vector<2x1x32xf32>
    "tpu.trace_start"() <{level = 10 : i32, message = "bkd,bnd->bkn"}> : () -> ()
    %cst_45 = arith.constant dense<0.000000e+00> : vector<2x1x16xf32>
    %143 = tpu.matmul %142, %0, %cst_45 {dimension_numbers = #tpu.dot_dimension_numbers<[2], [2], [1], [1], [0, 0, 0, 1, 1, 1], [0], [0]>} : vector<2x1x32xf32>, vector<2x16x32xf32>, vector<2x1x16xf32> -> vector<2x1x16xf32>
    %cst_46 = arith.constant 0.000000e+00 : f32
    "tpu.trace_stop"() : () -> ()
    %144 = vector.broadcast %cst_46 : f32 to vector<2x1x16xf32>
    %145 = arith.cmpf ogt, %1, %144 : vector<2x1x16xf32>
    %cst_47 = arith.constant -1.000000e+30 : f32
    %146 = vector.broadcast %cst_47 : f32 to vector<2x1x16xf32>
    %147 = arith.select %145, %143, %146 : vector<2x1x16xi1>, vector<2x1x16xf32>
    %cst_48 = arith.constant dense<0xFF800000> : vector<2x1xf32>
    %148 = vector.multi_reduction <maximumf>, %147, %cst_48 [2] : vector<2x1x16xf32> to vector<2x1xf32>
    %149 = vector.shape_cast %148 : vector<2x1xf32> to vector<2x1x1xf32>
    %150 = vector.broadcast %149 : vector<2x1x1xf32> to vector<2x1x16xf32>
    %151 = arith.subf %147, %150 : vector<2x1x16xf32>
    %152 = math.exp %151 : vector<2x1x16xf32>
    %153 = arith.mulf %152, %1 : vector<2x1x16xf32>
    %cst_49 = arith.constant dense<0.000000e+00> : vector<2x1xf32>
    %154 = vector.multi_reduction <add>, %153, %cst_49 [2] : vector<2x1x16xf32> to vector<2x1xf32>
    %155 = vector.shape_cast %154 : vector<2x1xf32> to vector<2x1x1xf32>
    %cst_50 = arith.constant 9.99999968E-21 : f32
    %156 = vector.broadcast %cst_50 : f32 to vector<2x1x1xf32>
    %157 = arith.addf %155, %156 : vector<2x1x1xf32>
    %158 = tpu.reciprocal %157 {approx = true} : vector<2x1x1xf32> -> vector<2x1x1xf32>
    %159 = vector.broadcast %158 : vector<2x1x1xf32> to vector<2x1x16xf32>
    %160 = arith.mulf %153, %159 : vector<2x1x16xf32>
    "tpu.trace_start"() <{level = 10 : i32, message = "bkn,bnd->bkd"}> : () -> ()
    %cst_51 = arith.constant dense<0.000000e+00> : vector<2x1x32xf32>
    %161 = tpu.matmul %160, %0, %cst_51 {dimension_numbers = #tpu.dot_dimension_numbers<[2], [1], [1], [2], [0, 0, 0, 1, 1, 2], [0], [0]>} : vector<2x1x16xf32>, vector<2x16x32xf32>, vector<2x1x32xf32> -> vector<2x1x32xf32>
    "tpu.trace_stop"() : () -> ()
    %162 = vector.shape_cast %161 : vector<2x1x32xf32> to vector<2x32xf32>
    %163 = tpu.concatenate %141, %162 in 1 : vector<2x32xf32>, vector<2x32xf32> -> vector<2x64xf32>
    %c0_52 = arith.constant 0 : index
    %c0_53 = arith.constant 0 : index
    %164 = vector.load %arg4[%c0_52, %c0_53] : memref<2x64xf32, #tpu.memory_space<vmem>>, vector<2x64xf32>
    tpu.vector_store %arg4[%c0_52, %c0_53], %163 {strides = array<i32>} : memref<2x64xf32, #tpu.memory_space<vmem>>, vector<2x64xf32>,
    return
  }
}

</mosaic_0001>

<llo_original>
// kernel: a_call__.1
$region0: #{a_call__.1}
  #allocation0 [shape = 'u32[]', space=smem, size = 0x4, offset = 0x4, fixed_abs, tag = 'smem constant byte address 0x4 - core index']
  #allocation1 [shape = 'u32[144,128]{1,0:T(1,128)}', space=vmem, size = 0x12000, scoped, tag = 'internal scratch']
  %s0 = inlined_call_operand.hbm [shape: f32[2,16,32], index: 0, kind: input, shape index: {}]
  %s1 = inlined_call_operand.vmem [shape: f32[2,1,16], index: 1, kind: input, shape index: {}]
  %s2 = inlined_call_operand.hbm [shape: f32[96,128], index: 2, kind: input, shape index: {}]
  %s3 = inlined_call_operand.vmem [shape: f32[1,128], index: 3, kind: input, shape index: {}]
  %s4 = inlined_call_operand.hbm [shape: f32[2,64], index: 4, kind: output, shape index: {}]
  %s5 = sld [smem:[#allocation0]]
  $region34: #{a_call__.1} parent=0
    _
  %s7 = ssub.s32 1, %s5
  %s8 = scalar_select 0, %s7, %s5
  $region1: #{a_call__.1} parent=0
    #allocation2 [shape = 'u8[16384]{0}', space=vmem, size = 0x4000, scoped, tag = 'input window, operand 0, single buffered']
    #allocation3 [shape = 's32[1]{0}', space=sflag, size = 0x4, scoped, tag = 'scoped memory for a_call__.1']
    #allocation4 [shape = 's32[1]{0}', space=sflag, size = 0x4, scoped, tag = 'scoped memory for a_call__.1']
    #allocation5 [shape = 'u8[49152]{0}', space=vmem, size = 0xc000, scoped, tag = 'input window, operand 2, single buffered']
    #allocation6 [shape = 's32[1]{0}', space=sflag, size = 0x4, scoped, tag = 'scoped memory for a_call__.1']
    #allocation7 [shape = 'u8[1024]{0}', space=vmem, size = 0x400, scoped, tag = 'output window, operand 0, single buffered']
    %9 = vsyncpa [#allocation3], 0
    %10 = vsyncpa [#allocation6], 0
    %11 = vsyncpa [#allocation4], 0
    // Predicated region
    $region2: #{a_call__.1} parent=1 // pred_check
      _
    $region3: #{a_call__.1} parent=1 // pred_check_branch
      %13 = sbr.rel (0) target = $region5
    $region4: #{a_call__.1} parent=1 // pred_region
      %s15 = ssub.s32 512, 512
      %16 = vsyncadd [#allocation3], %s15
      %s17 = sshll.u32 [#allocation2], 4
      %s18 = int_to_ptr.vmem [resolvable:$true] %s17
      %23 = dma.hbm_to_vmem [thread:$0]  %s0, 512, %s18, [#allocation3], 128, 128, 8
    $region5: #{a_call__.1} parent=1 // pred_fallthru
      _
    // Predicated region
    $region6: #{a_call__.1} parent=1 // pred_check
      _
    $region7: #{a_call__.1} parent=1 // pred_check_branch
      %25 = sbr.rel (0) target = $region9
    $region8: #{a_call__.1} parent=1 // pred_region
      _
    $region9: #{a_call__.1} parent=1 // pred_fallthru
      _
    // Predicated region
    $region10: #{a_call__.1} parent=1 // pred_check
      _
    $region11: #{a_call__.1} parent=1 // pred_check_branch
      %27 = sbr.rel (0) target = $region13
    $region12: #{a_call__.1} parent=1 // pred_region
      %s29 = ssub.s32 1536, 1536
      %30 = vsyncadd [#allocation6], %s29
      %s31 = sshll.u32 [#allocation5], 4
      %s32 = int_to_ptr.vmem [resolvable:$true] %s31
      %37 = dma.hbm_to_vmem [thread:$0]  %s2, 1536, %s32, [#allocation6], 128, 128, 8
    $region13: #{a_call__.1} parent=1 // pred_fallthru
      _
    // Predicated region
    $region14: #{a_call__.1} parent=1 // pred_check
      _
    $region15: #{a_call__.1} parent=1 // pred_check_branch
      %39 = sbr.rel (0) target = $region17
    $region16: #{a_call__.1} parent=1 // pred_region
      _
    $region17: #{a_call__.1} parent=1 // pred_fallthru
      _
    // Predicated region
    $region18: #{a_call__.1} parent=1 // pred_check
      _
    $region19: #{a_call__.1} parent=1 // pred_check_branch
      %41 = sbr.rel (0) target = $region21
    $region20: #{a_call__.1} parent=1 // pred_region
      %42 = dma.done [#allocation3], 512
    $region21: #{a_call__.1} parent=1 // pred_fallthru
      _
    // Predicated region
    $region22: #{a_call__.1} parent=1 // pred_check
      _
    $region23: #{a_call__.1} parent=1 // pred_check_branch
      %44 = sbr.rel (0) target = $region25
    $region24: #{a_call__.1} parent=1 // pred_region
      %45 = dma.done [#allocation6], 1536
    $region25: #{a_call__.1} parent=1 // pred_fallthru
      _
    %v46 = vld [vmem:[#allocation2] sm:$0xff]
    %v47 = vld [vmem:[#allocation2 + $0x8] sm:$0xff]
    %v48 = vld [vmem:[#allocation2 + $0x10] sm:$0xff]
    %v49 = vld [vmem:[#allocation2 + $0x18] sm:$0xff]
    %v50 = vld [vmem:[%s1] sm:$0x1]
    %v51 = vld [vmem:[%s1 + $0x1] sm:$0x1]
    %v52 = vld [vmem:[#allocation5] sm:$0xff]
    %v53 = vld [vmem:[#allocation5 + $0x8] sm:$0xff]
    %v54 = vld [vmem:[#allocation5 + $0x10] sm:$0xff]
    %v55 = vld [vmem:[#allocation5 + $0x18] sm:$0xff]
    %v56 = vld [vmem:[#allocation5 + $0x20] sm:$0xff]
    %v57 = vld [vmem:[#allocation5 + $0x28] sm:$0xff]
    %v58 = vld [vmem:[#allocation5 + $0x30] sm:$0xff]
    %v59 = vld [vmem:[#allocation5 + $0x38] sm:$0xff]
    %v60 = vld [vmem:[#allocation5 + $0x40] sm:$0xff]
    %v61 = vld [vmem:[#allocation5 + $0x48] sm:$0xff]
    %v62 = vld [vmem:[#allocation5 + $0x50] sm:$0xff]
    %v63 = vld [vmem:[#allocation5 + $0x58] sm:$0xff]
    %v64 = vld [vmem:[%s3] sm:$0x1]
    %v66 = vlaneseq
    %v67 = vshrl.u32 %v66, 7
    %v68 = vsub.s32 0, %v67
    %v69 = vrot.slane %v64, %v68
    %vm71 = vcmask 785408
    %v73 = vsel %vm71, 0.0, 0
    %75 = vmatprep.subr.mxu0 0.0
    %76 = vmatpush1.msra.mxu0 %v52
    %77 = vmatprep.subr.mxu0 0.0
    %78 = vmatpush1.msra.mxu0 %v53
    %79 = vmatprep.subr.mxu0 0.0
    %80 = vmatpush1.msra.mxu0 %v54
    %81 = vmatprep.subr.mxu0 0.0
    %82 = vmatpush1.msra.mxu0 %v55
    %83 = vmatprep.subr.mxu0 0.0
    %84 = vmatpush1.msra.mxu0 %v56
    %85 = vmatprep.subr.mxu0 0.0
    %86 = vmatpush1.msra.mxu0 %v57
    %87 = vmatprep.subr.mxu0 0.0
    %88 = vmatpush1.msra.mxu0 %v58
    %89 = vmatprep.subr.mxu0 0.0
    %90 = vmatpush1.msra.mxu0 %v59
    %91 = vmatprep.subr.mxu0 0.0
    %92 = vmatpush1.msra.mxu0 %v60
    %93 = vmatprep.subr.mxu0 0.0
    %94 = vmatpush1.msra.mxu0 %v61
    %95 = vmatprep.subr.mxu0 0.0
    %96 = vmatpush1.msra.mxu0 %v62
    %97 = vmatprep.subr.mxu0 0.0
    %98 = vmatpush1.msra.mxu0 %v63
    %99 = vmatprep.subr.mxu0 0.0
    %100 = vmatpush1.msra.mxu0 0.0
    %101 = vmatprep.subr.mxu0 0.0
    %102 = vmatpush1.msra.mxu0 0.0
    %103 = vmatprep.subr.mxu0 0.0
    %104 = vmatpush1.msra.mxu0 0.0
    %105 = vmatprep.subr.mxu0 0.0
    %106 = vmatpush1.msra.mxu0 0.0
    %107 = vmatprep.subr.mxu0 0.0
    %108 = vmatpush1.msra.mxu0 0.0
    %109 = vmatprep.subr.mxu0 0.0
    %110 = vmatpush1.msra.mxu0 0.0
    %111 = vmatprep.subr.mxu0 0.0
    %112 = vmatpush1.msra.mxu0 0.0
    %113 = vmatprep.subr.mxu0 0.0
    %114 = vmatpush1.msra.mxu0 0.0
    %115 = vmatprep.subr.mxu0 0.0
    %116 = vmatpush1.msra.mxu0 0.0
    %117 = vmatprep.subr.mxu0 0.0
    %118 = vmatpush1.msra.mxu0 0.0
    %119 = vmatprep.subr.mxu0 0.0
    %120 = vmatpush1.msra.mxu0 0.0
    %121 = vmatprep.subr.mxu0 0.0
    %122 = vmatpush1.msra.mxu0 0.0
    %123 = vmatprep.subr.mxu0 0.0
    %124 = vmatpush1.msra.mxu0 0.0
    %125 = vmatprep.subr.mxu0 0.0
    %126 = vmatpush1.msra.mxu0 0.0
    %127 = vmatprep.subr.mxu0 0.0
    %128 = vmatpush1.msra.mxu0 0.0
    %129 = vmatprep.subr.mxu0 0.0
    %130 = vmatpush1.msra.mxu0 0.0
    %131 = vmatprep.subr.mxu0 0.0
    %132 = vmatpush1.msra.mxu0 0.0
    %133 = vmatprep.subr.mxu0 0.0
    %134 = vmatpush1.msra.mxu0 0.0
    %135 = vmatprep.subr.mxu0 0.0
    %136 = vmatpush1.msra.mxu0 0.0
    %137 = vmatprep.subr.mxu0 0.0
    %138 = vmatpush1.msra.mxu0 0.0
    %139 = vmatprep.mubr.f32.mxu0 0.0
    %140 = vmatmul.mubr.f32.gmra.mrb[0].mxu0 %v73
    %v141 = vpop.f32.mrb[0].mxu0
    %v142 = vadd.f32 %v69, %v141
    %v143 = vpop.f32.mrb[0].mxu0
    %144 = vdwg.mxu0
    %v145 = vxor.u32 %v142, 2147483648
    %v146 = vmul.f32 %v145, 1.442695
    %v147 = vpow.pop %v146
    %v148 = vadd.f32 %v147, 1.0
    %v149 = vrcp.pop %v148
    %v150 = vmul.f32 1.0, %v149
    %v151 = vtanh.pop %v142
    %v152 = vmul.f32 %v150, 0.0
    %154 = vrot.lane.b32.xlu0 %v151, 64
    %v155 = vpop.permute.xlu0 %154
    %v157 = vmul.f32 %v150, %v155
    %159 = vrot.lane.b32.xlu0 %v157, 32
    %v160 = vpop.permute.xlu0 %159
    %v162 = vadd.f32 %v152, %v160
    %v163 = vtanh.pop %v162
    %165 = vrot.lane.b32.xlu0 %v163, 64
    %v166 = vpop.permute.xlu0 %165
    %v168 = vmul.f32 %v150, %v166
    %v171 = vunpack.c.l.s4 1966171168
    %v172 = vunpack.c.0.s8 %v171
    %v173 = vlaneseq
    %v174 = vshrl.u32 %v173, 7
    %v175 = vsub.s32 %v172, %v174
    %v176 = vrot.slane %v168, %v175
    %v177 = vcombine.high %v176, %v176
    %v179 = vunpack.c.l.s4 1966171168
    %v180 = vunpack.c.0.s8 %v179
    %v181 = vlaneseq
    %v182 = vshrl.u32 %v181, 7
    %v183 = vsub.s32 %v180, %v182
    %v184 = vrot.slane %v176, %v183
    %v186 = vunpack.c.l.s4 1966171168
    %v187 = vunpack.c.0.s8 %v186
    %v188 = vlaneseq
    %v189 = vshrl.u32 %v188, 7
    %v190 = vsub.s32 %v187, %v189
    %v191 = vrot.slane %v177, %v190
    %v192 = vlaneseq
    %v193 = vshrl.u32 %v192, 7
    %v194 = vsub.s32 0, %v193
    %v195 = vrot.slane %v184, %v194
    %196 = vrot.lane.b32.xlu0 %v195, 32
    %v197 = vpop.permute.xlu0 %196
    %vm198 = vcmask 261120
    %v199 = vsel %vm198, %v197, 0
    %v202 = vsel %vm198, %v46, 0
    %v205 = vsel %vm198, %v47, 0
    %207 = vmatprep.subr.mxu0 0.0
    %208 = vmatpush1.xpose.msra.mxu0 %v202
    %209 = vmatprep.subr.mxu0 0.0
    %210 = vmatpush1.xpose.msra.mxu0 %v205
    %211 = vmatprep.subr.mxu0 0.0
    %212 = vmatpush1.xpose.msra.mxu0 0.0
    %213 = vmatprep.subr.mxu0 0.0
    %214 = vmatpush1.xpose.msra.mxu0 0.0
    %215 = vmatprep.subr.mxu0 0.0
    %216 = vmatpush1.xpose.msra.mxu0 0.0
    %217 = vmatprep.subr.mxu0 0.0
    %218 = vmatpush1.xpose.msra.mxu0 0.0
    %219 = vmatprep.subr.mxu0 0.0
    %220 = vmatpush1.xpose.msra.mxu0 0.0
    %221 = vmatprep.subr.mxu0 0.0
    %222 = vmatpush1.xpose.msra.mxu0 0.0
    %223 = vmatprep.subr.mxu0 0.0
    %224 = vmatpush1.xpose.msra.mxu0 0.0
    %225 = vmatprep.subr.mxu0 0.0
    %226 = vmatpush1.xpose.msra.mxu0 0.0
    %227 = vmatprep.subr.mxu0 0.0
    %228 = vmatpush1.xpose.msra.mxu0 0.0
    %229 = vmatprep.subr.mxu0 0.0
    %230 = vmatpush1.xpose.msra.mxu0 0.0
    %231 = vmatprep.subr.mxu0 0.0
    %232 = vmatpush1.xpose.msra.mxu0 0.0
    %233 = vmatprep.subr.mxu0 0.0
    %234 = vmatpush1.xpose.msra.mxu0 0.0
    %235 = vmatprep.subr.mxu0 0.0
    %236 = vmatpush1.xpose.msra.mxu0 0.0
    %237 = vmatprep.subr.mxu0 0.0
    %238 = vmatpush1.xpose.msra.mxu0 0.0
    %239 = vmatprep.subr.mxu0 0.0
    %240 = vmatpush1.xpose.msra.mxu0 0.0
    %241 = vmatprep.subr.mxu0 0.0
    %242 = vmatpush1.xpose.msra.mxu0 0.0
    %243 = vmatprep.subr.mxu0 0.0
    %244 = vmatpush1.xpose.msra.mxu0 0.0
    %245 = vmatprep.subr.mxu0 0.0
    %246 = vmatpush1.xpose.msra.mxu0 0.0
    %247 = vmatprep.subr.mxu0 0.0
    %248 = vmatpush1.xpose.msra.mxu0 0.0
    %249 = vmatprep.subr.mxu0 0.0
    %250 = vmatpush1.xpose.msra.mxu0 0.0
    %251 = vmatprep.subr.mxu0 0.0
    %252 = vmatpush1.xpose.msra.mxu0 0.0
    %253 = vmatprep.subr.mxu0 0.0
    %254 = vmatpush1.xpose.msra.mxu0 0.0
    %255 = vmatprep.subr.mxu0 0.0
    %256 = vmatpush1.xpose.msra.mxu0 0.0
    %257 = vmatprep.subr.mxu0 0.0
    %258 = vmatpush1.xpose.msra.mxu0 0.0
    %259 = vmatprep.subr.mxu0 0.0
    %260 = vmatpush1.xpose.msra.mxu0 0.0
    %261 = vmatprep.subr.mxu0 0.0
    %262 = vmatpush1.xpose.msra.mxu0 0.0
    %263 = vmatprep.subr.mxu0 0.0
    %264 = vmatpush1.xpose.msra.mxu0 0.0
    %265 = vmatprep.subr.mxu0 0.0
    %266 = vmatpush1.xpose.msra.mxu0 0.0
    %267 = vmatprep.subr.mxu0 0.0
    %268 = vmatpush1.xpose.msra.mxu0 0.0
    %269 = vmatprep.subr.mxu0 0.0
    %270 = vmatpush1.xpose.msra.mxu0 0.0
    %271 = vmatprep.mubr.f32.mxu0 0.0
    %272 = vmatmul.mubr.f32.gmra.mrb[0].mxu0 %v199
    %v273 = vpop.f32.mrb[0].mxu0
    %v274 = vadd.f32 0.0, %v273
    %v275 = vpop.f32.mrb[0].mxu0
    %276 = vdwg.mxu0
    %v277 = vlaneseq
    %v278 = vshrl.u32 %v277, 7
    %v279 = vsub.s32 0, %v278
    %v280 = vrot.slane %v191, %v279
    %281 = vrot.lane.b32.xlu0 %v280, 32
    %v282 = vpop.permute.xlu0 %281
    %v283 = vsel %vm198, %v282, 0
    %v286 = vsel %vm198, %v48, 0
    %v289 = vsel %vm198, %v49, 0
    %291 = vmatprep.subr.mxu0 0.0
    %292 = vmatpush1.xpose.msra.mxu0 %v286
    %293 = vmatprep.subr.mxu0 0.0
    %294 = vmatpush1.xpose.msra.mxu0 %v289
    %295 = vmatprep.subr.mxu0 0.0
    %296 = vmatpush1.xpose.msra.mxu0 0.0
    %297 = vmatprep.subr.mxu0 0.0
    %298 = vmatpush1.xpose.msra.mxu0 0.0
    %299 = vmatprep.subr.mxu0 0.0
    %300 = vmatpush1.xpose.msra.mxu0 0.0
    %301 = vmatprep.subr.mxu0 0.0
    %302 = vmatpush1.xpose.msra.mxu0 0.0
    %303 = vmatprep.subr.mxu0 0.0
    %304 = vmatpush1.xpose.msra.mxu0 0.0
    %305 = vmatprep.subr.mxu0 0.0
    %306 = vmatpush1.xpose.msra.mxu0 0.0
    %307 = vmatprep.subr.mxu0 0.0
    %308 = vmatpush1.xpose.msra.mxu0 0.0
    %309 = vmatprep.subr.mxu0 0.0
    %310 = vmatpush1.xpose.msra.mxu0 0.0
    %311 = vmatprep.subr.mxu0 0.0
    %312 = vmatpush1.xpose.msra.mxu0 0.0
    %313 = vmatprep.subr.mxu0 0.0
    %314 = vmatpush1.xpose.msra.mxu0 0.0
    %315 = vmatprep.subr.mxu0 0.0
    %316 = vmatpush1.xpose.msra.mxu0 0.0
    %317 = vmatprep.subr.mxu0 0.0
    %318 = vmatpush1.xpose.msra.mxu0 0.0
    %319 = vmatprep.subr.mxu0 0.0
    %320 = vmatpush1.xpose.msra.mxu0 0.0
    %321 = vmatprep.subr.mxu0 0.0
    %322 = vmatpush1.xpose.msra.mxu0 0.0
    %323 = vmatprep.subr.mxu0 0.0
    %324 = vmatpush1.xpose.msra.mxu0 0.0
    %325 = vmatprep.subr.mxu0 0.0
    %326 = vmatpush1.xpose.msra.mxu0 0.0
    %327 = vmatprep.subr.mxu0 0.0
    %328 = vmatpush1.xpose.msra.mxu0 0.0
    %329 = vmatprep.subr.mxu0 0.0
    %330 = vmatpush1.xpose.msra.mxu0 0.0
    %331 = vmatprep.subr.mxu0 0.0
    %332 = vmatpush1.xpose.msra.mxu0 0.0
    %333 = vmatprep.subr.mxu0 0.0
    %334 = vmatpush1.xpose.msra.mxu0 0.0
    %335 = vmatprep.subr.mxu0 0.0
    %336 = vmatpush1.xpose.msra.mxu0 0.0
    %337 = vmatprep.subr.mxu0 0.0
    %338 = vmatpush1.xpose.msra.mxu0 0.0
    %339 = vmatprep.subr.mxu0 0.0
    %340 = vmatpush1.xpose.msra.mxu0 0.0
    %341 = vmatprep.subr.mxu0 0.0
    %342 = vmatpush1.xpose.msra.mxu0 0.0
    %343 = vmatprep.subr.mxu0 0.0
    %344 = vmatpush1.xpose.msra.mxu0 0.0
    %345 = vmatprep.subr.mxu0 0.0
    %346 = vmatpush1.xpose.msra.mxu0 0.0
    %347 = vmatprep.subr.mxu0 0.0
    %348 = vmatpush1.xpose.msra.mxu0 0.0
    %349 = vmatprep.subr.mxu0 0.0
    %350 = vmatpush1.xpose.msra.mxu0 0.0
    %351 = vmatprep.subr.mxu0 0.0
    %352 = vmatpush1.xpose.msra.mxu0 0.0
    %353 = vmatprep.subr.mxu0 0.0
    %354 = vmatpush1.xpose.msra.mxu0 0.0
    %355 = vmatprep.mubr.f32.mxu0 0.0
    %356 = vmatmul.mubr.f32.gmra.mrb[0].mxu0 %v283
    %v357 = vpop.f32.mrb[0].mxu0
    %v358 = vadd.f32 0.0, %v357
    %v359 = vpop.f32.mrb[0].mxu0
    %360 = vdwg.mxu0
    %vm361 = vcmp.gt.f32.partialorder %v50, 0.0
    %vm362 = vcmp.gt.f32.partialorder %v51, 0.0
    %v363 = vsel %vm361, %v274, -1e+30
    %v364 = vsel %vm362, %v358, -1e+30
    %vm365 = vcmask 122880
    %v366 = vsel %vm365, %v363, -inf
    %367 = vmax.xlane.f32.xlu0 %v366
    %v368 = vpop.xlane.xlu0 %367
    %v369 = vsel %vm365, %v364, -inf
    %370 = vmax.xlane.f32.xlu0 %v369
    %v371 = vpop.xlane.xlu0 %370
    %v372 = vsub.f32 %v363, %v368
    %v373 = vsub.f32 %v364, %v371
    %v374 = vmul.f32 %v372, 1.442695
    %v375 = vpow.pop %v374
    %v376 = vmul.f32 %v373, 1.442695
    %v377 = vpow.pop %v376
    %v378 = vmul.f32 %v375, %v50
    %v379 = vmul.f32 %v377, %v51
    %v380 = vsel %vm365, %v378, 0.0
    %381 = vadd.xlane.f32.xlu0 %v380
    %v382 = vpop.xlane.xlu0 %381
    %v383 = vsel %vm365, %v379, 0.0
    %384 = vadd.xlane.f32.xlu0 %v383
    %v385 = vpop.xlane.xlu0 %384
    %v386 = vadd.f32 %v382, 1e-20
    %v387 = vadd.f32 %v385, 1e-20
    %v388 = vrcp.pop %v386
    %v389 = vrcp.pop %v387
    %v390 = vmul.f32 %v378, %v388
    %v391 = vmul.f32 %v379, %v389
    %vm392 = vcmask 130048
    %v394 = vsel %vm392, %v390, 0
    %396 = vmatprep.subr.mxu0 0.0
    %397 = vmatpush1.msra.mxu0 %v46
    %398 = vmatprep.subr.mxu0 0.0
    %399 = vmatpush1.msra.mxu0 %v47
    %400 = vmatprep.subr.mxu0 0.0
    %401 = vmatpush1.msra.mxu0 0.0
    %402 = vmatprep.subr.mxu0 0.0
    %403 = vmatpush1.msra.mxu0 0.0
    %404 = vmatprep.subr.mxu0 0.0
    %405 = vmatpush1.msra.mxu0 0.0
    %406 = vmatprep.subr.mxu0 0.0
    %407 = vmatpush1.msra.mxu0 0.0
    %408 = vmatprep.subr.mxu0 0.0
    %409 = vmatpush1.msra.mxu0 0.0
    %410 = vmatprep.subr.mxu0 0.0
    %411 = vmatpush1.msra.mxu0 0.0
    %412 = vmatprep.subr.mxu0 0.0
    %413 = vmatpush1.msra.mxu0 0.0
    %414 = vmatprep.subr.mxu0 0.0
    %415 = vmatpush1.msra.mxu0 0.0
    %416 = vmatprep.subr.mxu0 0.0
    %417 = vmatpush1.msra.mxu0 0.0
    %418 = vmatprep.subr.mxu0 0.0
    %419 = vmatpush1.msra.mxu0 0.0
    %420 = vmatprep.subr.mxu0 0.0
    %421 = vmatpush1.msra.mxu0 0.0
    %422 = vmatprep.subr.mxu0 0.0
    %423 = vmatpush1.msra.mxu0 0.0
    %424 = vmatprep.subr.mxu0 0.0
    %425 = vmatpush1.msra.mxu0 0.0
    %426 = vmatprep.subr.mxu0 0.0
    %427 = vmatpush1.msra.mxu0 0.0
    %428 = vmatprep.subr.mxu0 0.0
    %429 = vmatpush1.msra.mxu0 0.0
    %430 = vmatprep.subr.mxu0 0.0
    %431 = vmatpush1.msra.mxu0 0.0
    %432 = vmatprep.subr.mxu0 0.0
    %433 = vmatpush1.msra.mxu0 0.0
    %434 = vmatprep.subr.mxu0 0.0
    %435 = vmatpush1.msra.mxu0 0.0
    %436 = vmatprep.subr.mxu0 0.0
    %437 = vmatpush1.msra.mxu0 0.0
    %438 = vmatprep.subr.mxu0 0.0
    %439 = vmatpush1.msra.mxu0 0.0
    %440 = vmatprep.subr.mxu0 0.0
    %441 = vmatpush1.msra.mxu0 0.0
    %442 = vmatprep.subr.mxu0 0.0
    %443 = vmatpush1.msra.mxu0 0.0
    %444 = vmatprep.subr.mxu0 0.0
    %445 = vmatpush1.msra.mxu0 0.0
    %446 = vmatprep.subr.mxu0 0.0
    %447 = vmatpush1.msra.mxu0 0.0
    %448 = vmatprep.subr.mxu0 0.0
    %449 = vmatpush1.msra.mxu0 0.0
    %450 = vmatprep.subr.mxu0 0.0
    %451 = vmatpush1.msra.mxu0 0.0
    %452 = vmatprep.subr.mxu0 0.0
    %453 = vmatpush1.msra.mxu0 0.0
    %454 = vmatprep.subr.mxu0 0.0
    %455 = vmatpush1.msra.mxu0 0.0
    %456 = vmatprep.subr.mxu0 0.0
    %457 = vmatpush1.msra.mxu0 0.0
    %458 = vmatprep.subr.mxu0 0.0
    %459 = vmatpush1.msra.mxu0 0.0
    %460 = vmatprep.mubr.f32.mxu0 0.0
    %461 = vmatmul.mubr.f32.gmra.mrb[0].mxu0 %v394
    %v462 = vpop.f32.mrb[0].mxu0
    %v463 = vadd.f32 0.0, %v462
    %v464 = vpop.f32.mrb[0].mxu0
    %465 = vdwg.mxu0
    %v467 = vsel %vm392, %v391, 0
    %469 = vmatprep.subr.mxu0 0.0
    %470 = vmatpush1.msra.mxu0 %v48
    %471 = vmatprep.subr.mxu0 0.0
    %472 = vmatpush1.msra.mxu0 %v49
    %473 = vmatprep.subr.mxu0 0.0
    %474 = vmatpush1.msra.mxu0 0.0
    %475 = vmatprep.subr.mxu0 0.0
    %476 = vmatpush1.msra.mxu0 0.0
    %477 = vmatprep.subr.mxu0 0.0
    %478 = vmatpush1.msra.mxu0 0.0
    %479 = vmatprep.subr.mxu0 0.0
    %480 = vmatpush1.msra.mxu0 0.0
    %481 = vmatprep.subr.mxu0 0.0
    %482 = vmatpush1.msra.mxu0 0.0
    %483 = vmatprep.subr.mxu0 0.0
    %484 = vmatpush1.msra.mxu0 0.0
    %485 = vmatprep.subr.mxu0 0.0
    %486 = vmatpush1.msra.mxu0 0.0
    %487 = vmatprep.subr.mxu0 0.0
    %488 = vmatpush1.msra.mxu0 0.0
    %489 = vmatprep.subr.mxu0 0.0
    %490 = vmatpush1.msra.mxu0 0.0
    %491 = vmatprep.subr.mxu0 0.0
    %492 = vmatpush1.msra.mxu0 0.0
    %493 = vmatprep.subr.mxu0 0.0
    %494 = vmatpush1.msra.mxu0 0.0
    %495 = vmatprep.subr.mxu0 0.0
    %496 = vmatpush1.msra.mxu0 0.0
    %497 = vmatprep.subr.mxu0 0.0
    %498 = vmatpush1.msra.mxu0 0.0
    %499 = vmatprep.subr.mxu0 0.0
    %500 = vmatpush1.msra.mxu0 0.0
    %501 = vmatprep.subr.mxu0 0.0
    %502 = vmatpush1.msra.mxu0 0.0
    %503 = vmatprep.subr.mxu0 0.0
    %504 = vmatpush1.msra.mxu0 0.0
    %505 = vmatprep.subr.mxu0 0.0
    %506 = vmatpush1.msra.mxu0 0.0
    %507 = vmatprep.subr.mxu0 0.0
    %508 = vmatpush1.msra.mxu0 0.0
    %509 = vmatprep.subr.mxu0 0.0
    %510 = vmatpush1.msra.mxu0 0.0
    %511 = vmatprep.subr.mxu0 0.0
    %512 = vmatpush1.msra.mxu0 0.0
    %513 = vmatprep.subr.mxu0 0.0
    %514 = vmatpush1.msra.mxu0 0.0
    %515 = vmatprep.subr.mxu0 0.0
    %516 = vmatpush1.msra.mxu0 0.0
    %517 = vmatprep.subr.mxu0 0.0
    %518 = vmatpush1.msra.mxu0 0.0
    %519 = vmatprep.subr.mxu0 0.0
    %520 = vmatpush1.msra.mxu0 0.0
    %521 = vmatprep.subr.mxu0 0.0
    %522 = vmatpush1.msra.mxu0 0.0
    %523 = vmatprep.subr.mxu0 0.0
    %524 = vmatpush1.msra.mxu0 0.0
    %525 = vmatprep.subr.mxu0 0.0
    %526 = vmatpush1.msra.mxu0 0.0
    %527 = vmatprep.subr.mxu0 0.0
    %528 = vmatpush1.msra.mxu0 0.0
    %529 = vmatprep.subr.mxu0 0.0
    %530 = vmatpush1.msra.mxu0 0.0
    %531 = vmatprep.subr.mxu0 0.0
    %532 = vmatpush1.msra.mxu0 0.0
    %533 = vmatprep.mubr.f32.mxu0 0.0
    %534 = vmatmul.mubr.f32.gmra.mrb[0].mxu0 %v467
    %v535 = vpop.f32.mrb[0].mxu0
    %v536 = vadd.f32 0.0, %v535
    %v537 = vpop.f32.mrb[0].mxu0
    %538 = vdwg.mxu0
    %539 = vrot.lane.b32.xlu0 %v168, 32
    %v540 = vpop.permute.xlu0 %539
    %v544 = vrot.slane %v536, 7
    %vm545 = vcmask 1041409
    %v546 = vsel %vm545, %v544, %v463
    %547 = vrot.lane.b32.xlu0 %v546, 32
    %v548 = vpop.permute.xlu0 %547
    %v550 = vsel %vm198, %v540, %v548
    %v551 = vld [vmem:[#allocation5] sm:$0xff]
    %v552 = vld [vmem:[#allocation5 + $0x8] sm:$0xff]
    %v553 = vld [vmem:[#allocation5 + $0x10] sm:$0xff]
    %v554 = vld [vmem:[#allocation5 + $0x18] sm:$0xff]
    %v555 = vld [vmem:[#allocation5 + $0x20] sm:$0xff]
    %v556 = vld [vmem:[#allocation5 + $0x28] sm:$0xff]
    %v557 = vld [vmem:[#allocation5 + $0x30] sm:$0xff]
    %v558 = vld [vmem:[#allocation5 + $0x38] sm:$0xff]
    %v559 = vld [vmem:[#allocation5 + $0x40] sm:$0xff]
    %v560 = vld [vmem:[#allocation5 + $0x48] sm:$0xff]
    %v561 = vld [vmem:[#allocation5 + $0x50] sm:$0xff]
    %v562 = vld [vmem:[#allocation5 + $0x58] sm:$0xff]
    %v563 = vld [vmem:[%s3] sm:$0x1]
    %564 = vrot.lane.b32.xlu0 %v168, 96
    %v565 = vpop.permute.xlu0 %564
    %vm567 = vcmask 523264
    %v568 = vsel %vm567, %v550, %v565
    %v570 = vlaneseq
    %v571 = vshrl.u32 %v570, 7
    %v572 = vsub.s32 0, %v571
    %v573 = vrot.slane %v563, %v572
    %v576 = vsel %vm71, %v568, 0
    %578 = vmatprep.subr.mxu0 0.0
    %579 = vmatpush1.msra.mxu0 %v551
    %580 = vmatprep.subr.mxu0 0.0
    %581 = vmatpush1.msra.mxu0 %v552
    %582 = vmatprep.subr.mxu0 0.0
    %583 = vmatpush1.msra.mxu0 %v553
    %584 = vmatprep.subr.mxu0 0.0
    %585 = vmatpush1.msra.mxu0 %v554
    %586 = vmatprep.subr.mxu0 0.0
    %587 = vmatpush1.msra.mxu0 %v555
    %588 = vmatprep.subr.mxu0 0.0
    %589 = vmatpush1.msra.mxu0 %v556
    %590 = vmatprep.subr.mxu0 0.0
    %591 = vmatpush1.msra.mxu0 %v557
    %592 = vmatprep.subr.mxu0 0.0
    %593 = vmatpush1.msra.mxu0 %v558
    %594 = vmatprep.subr.mxu0 0.0
    %595 = vmatpush1.msra.mxu0 %v559
    %596 = vmatprep.subr.mxu0 0.0
    %597 = vmatpush1.msra.mxu0 %v560
    %598 = vmatprep.subr.mxu0 0.0
    %599 = vmatpush1.msra.mxu0 %v561
    %600 = vmatprep.subr.mxu0 0.0
    %601 = vmatpush1.msra.mxu0 %v562
    %602 = vmatprep.subr.mxu0 0.0
    %603 = vmatpush1.msra.mxu0 0.0
    %604 = vmatprep.subr.mxu0 0.0
    %605 = vmatpush1.msra.mxu0 0.0
    %606 = vmatprep.subr.mxu0 0.0
    %607 = vmatpush1.msra.mxu0 0.0
    %608 = vmatprep.subr.mxu0 0.0
    %609 = vmatpush1.msra.mxu0 0.0
    %610 = vmatprep.subr.mxu0 0.0
    %611 = vmatpush1.msra.mxu0 0.0
    %612 = vmatprep.subr.mxu0 0.0
    %613 = vmatpush1.msra.mxu0 0.0
    %614 = vmatprep.subr.mxu0 0.0
    %615 = vmatpush1.msra.mxu0 0.0
    %616 = vmatprep.subr.mxu0 0.0
    %617 = vmatpush1.msra.mxu0 0.0
    %618 = vmatprep.subr.mxu0 0.0
    %619 = vmatpush1.msra.mxu0 0.0
    %620 = vmatprep.subr.mxu0 0.0
    %621 = vmatpush1.msra.mxu0 0.0
    %622 = vmatprep.subr.mxu0 0.0
    %623 = vmatpush1.msra.mxu0 0.0
    %624 = vmatprep.subr.mxu0 0.0
    %625 = vmatpush1.msra.mxu0 0.0
    %626 = vmatprep.subr.mxu0 0.0
    %627 = vmatpush1.msra.mxu0 0.0
    %628 = vmatprep.subr.mxu0 0.0
    %629 = vmatpush1.msra.mxu0 0.0
    %630 = vmatprep.subr.mxu0 0.0
    %631 = vmatpush1.msra.mxu0 0.0
    %632 = vmatprep.subr.mxu0 0.0
    %633 = vmatpush1.msra.mxu0 0.0
    %634 = vmatprep.subr.mxu0 0.0
    %635 = vmatpush1.msra.mxu0 0.0
    %636 = vmatprep.subr.mxu0 0.0
    %637 = vmatpush1.msra.mxu0 0.0
    %638 = vmatprep.subr.mxu0 0.0
    %639 = vmatpush1.msra.mxu0 0.0
    %640 = vmatprep.subr.mxu0 0.0
    %641 = vmatpush1.msra.mxu0 0.0
    %642 = vmatprep.mubr.f32.mxu0 0.0
    %643 = vmatmul.mubr.f32.gmra.mrb[0].mxu0 %v576
    %v644 = vpop.f32.mrb[0].mxu0
    %v645 = vadd.f32 %v573, %v644
    %v646 = vpop.f32.mrb[0].mxu0
    %647 = vdwg.mxu0
    %v648 = vxor.u32 %v645, 2147483648
    %v649 = vmul.f32 %v648, 1.442695
    %v650 = vpow.pop %v649
    %v651 = vadd.f32 %v650, 1.0
    %v652 = vrcp.pop %v651
    %v653 = vmul.f32 1.0, %v652
    %v654 = vtanh.pop %v645
    %v655 = vmul.f32 %v653, %v162
    %657 = vrot.lane.b32.xlu0 %v654, 64
    %v658 = vpop.permute.xlu0 %657
    %v660 = vmul.f32 %v653, %v658
    %662 = vrot.lane.b32.xlu0 %v660, 32
    %v663 = vpop.permute.xlu0 %662
    %v665 = vadd.f32 %v655, %v663
    %v666 = vtanh.pop %v665
    %668 = vrot.lane.b32.xlu0 %v666, 64
    %v669 = vpop.permute.xlu0 %668
    %v671 = vmul.f32 %v653, %v669
    %v674 = vunpack.c.l.s4 1966171168
    %v675 = vunpack.c.0.s8 %v674
    %v676 = vlaneseq
    %v677 = vshrl.u32 %v676, 7
    %v678 = vsub.s32 %v675, %v677
    %v679 = vrot.slane %v671, %v678
    %v680 = vcombine.high %v679, %v679
    %v682 = vunpack.c.l.s4 1966171168
    %v683 = vunpack.c.0.s8 %v682
    %v684 = vlaneseq
    %v685 = vshrl.u32 %v684, 7
    %v686 = vsub.s32 %v683, %v685
    %v687 = vrot.slane %v679, %v686
    %v689 = vunpack.c.l.s4 1966171168
    %v690 = vunpack.c.0.s8 %v689
    %v691 = vlaneseq
    %v692 = vshrl.u32 %v691, 7
    %v693 = vsub.s32 %v690, %v692
    %v694 = vrot.slane %v680, %v693
    %v695 = vlaneseq
    %v696 = vshrl.u32 %v695, 7
    %v697 = vsub.s32 0, %v696
    %v698 = vrot.slane %v687, %v697
    %699 = vrot.lane.b32.xlu0 %v698, 32
    %v700 = vpop.permute.xlu0 %699
    %v701 = vsel %vm198, %v700, 0
    %703 = vmatprep.subr.mxu0 0.0
    %704 = vmatpush1.xpose.msra.mxu0 %v202
    %705 = vmatprep.subr.mxu0 0.0
    %706 = vmatpush1.xpose.msra.mxu0 %v205
    %707 = vmatprep.subr.mxu0 0.0
    %708 = vmatpush1.xpose.msra.mxu0 0.0
    %709 = vmatprep.subr.mxu0 0.0
    %710 = vmatpush1.xpose.msra.mxu0 0.0
    %711 = vmatprep.subr.mxu0 0.0
    %712 = vmatpush1.xpose.msra.mxu0 0.0
    %713 = vmatprep.subr.mxu0 0.0
    %714 = vmatpush1.xpose.msra.mxu0 0.0
    %715 = vmatprep.subr.mxu0 0.0
    %716 = vmatpush1.xpose.msra.mxu0 0.0
    %717 = vmatprep.subr.mxu0 0.0
    %718 = vmatpush1.xpose.msra.mxu0 0.0
    %719 = vmatprep.subr.mxu0 0.0
    %720 = vmatpush1.xpose.msra.mxu0 0.0
    %721 = vmatprep.subr.mxu0 0.0
    %722 = vmatpush1.xpose.msra.mxu0 0.0
    %723 = vmatprep.subr.mxu0 0.0
    %724 = vmatpush1.xpose.msra.mxu0 0.0
    %725 = vmatprep.subr.mxu0 0.0
    %726 = vmatpush1.xpose.msra.mxu0 0.0
    %727 = vmatprep.subr.mxu0 0.0
    %728 = vmatpush1.xpose.msra.mxu0 0.0
    %729 = vmatprep.subr.mxu0 0.0
    %730 = vmatpush1.xpose.msra.mxu0 0.0
    %731 = vmatprep.subr.mxu0 0.0
    %732 = vmatpush1.xpose.msra.mxu0 0.0
    %733 = vmatprep.subr.mxu0 0.0
    %734 = vmatpush1.xpose.msra.mxu0 0.0
    %735 = vmatprep.subr.mxu0 0.0
    %736 = vmatpush1.xpose.msra.mxu0 0.0
    %737 = vmatprep.subr.mxu0 0.0
    %738 = vmatpush1.xpose.msra.mxu0 0.0
    %739 = vmatprep.subr.mxu0 0.0
    %740 = vmatpush1.xpose.msra.mxu0 0.0
    %741 = vmatprep.subr.mxu0 0.0
    %742 = vmatpush1.xpose.msra.mxu0 0.0
    %743 = vmatprep.subr.mxu0 0.0
    %744 = vmatpush1.xpose.msra.mxu0 0.0
    %745 = vmatprep.subr.mxu0 0.0
    %746 = vmatpush1.xpose.msra.mxu0 0.0
    %747 = vmatprep.subr.mxu0 0.0
    %748 = vmatpush1.xpose.msra.mxu0 0.0
    %749 = vmatprep.subr.mxu0 0.0
    %750 = vmatpush1.xpose.msra.mxu0 0.0
    %751 = vmatprep.subr.mxu0 0.0
    %752 = vmatpush1.xpose.msra.mxu0 0.0
    %753 = vmatprep.subr.mxu0 0.0
    %754 = vmatpush1.xpose.msra.mxu0 0.0
    %755 = vmatprep.subr.mxu0 0.0
    %756 = vmatpush1.xpose.msra.mxu0 0.0
    %757 = vmatprep.subr.mxu0 0.0
    %758 = vmatpush1.xpose.msra.mxu0 0.0
    %759 = vmatprep.subr.mxu0 0.0
    %760 = vmatpush1.xpose.msra.mxu0 0.0
    %761 = vmatprep.subr.mxu0 0.0
    %762 = vmatpush1.xpose.msra.mxu0 0.0
    %763 = vmatprep.subr.mxu0 0.0
    %764 = vmatpush1.xpose.msra.mxu0 0.0
    %765 = vmatprep.subr.mxu0 0.0
    %766 = vmatpush1.xpose.msra.mxu0 0.0
    %767 = vmatprep.mubr.f32.mxu0 0.0
    %768 = vmatmul.mubr.f32.gmra.mrb[0].mxu0 %v701
    %v769 = vpop.f32.mrb[0].mxu0
    %v770 = vadd.f32 0.0, %v769
    %v771 = vpop.f32.mrb[0].mxu0
    %772 = vdwg.mxu0
    %v773 = vlaneseq
    %v774 = vshrl.u32 %v773, 7
    %v775 = vsub.s32 0, %v774
    %v776 = vrot.slane %v694, %v775
    %777 = vrot.lane.b32.xlu0 %v776, 32
    %v778 = vpop.permute.xlu0 %777
    %v779 = vsel %vm198, %v778, 0
    %781 = vmatprep.subr.mxu0 0.0
    %782 = vmatpush1.xpose.msra.mxu0 %v286
    %783 = vmatprep.subr.mxu0 0.0
    %784 = vmatpush1.xpose.msra.mxu0 %v289
    %785 = vmatprep.subr.mxu0 0.0
    %786 = vmatpush1.xpose.msra.mxu0 0.0
    %787 = vmatprep.subr.mxu0 0.0
    %788 = vmatpush1.xpose.msra.mxu0 0.0
    %789 = vmatprep.subr.mxu0 0.0
    %790 = vmatpush1.xpose.msra.mxu0 0.0
    %791 = vmatprep.subr.mxu0 0.0
    %792 = vmatpush1.xpose.msra.mxu0 0.0
    %793 = vmatprep.subr.mxu0 0.0
    %794 = vmatpush1.xpose.msra.mxu0 0.0
    %795 = vmatprep.subr.mxu0 0.0
    %796 = vmatpush1.xpose.msra.mxu0 0.0
    %797 = vmatprep.subr.mxu0 0.0
    %798 = vmatpush1.xpose.msra.mxu0 0.0
    %799 = vmatprep.subr.mxu0 0.0
    %800 = vmatpush1.xpose.msra.mxu0 0.0
    %801 = vmatprep.subr.mxu0 0.0
    %802 = vmatpush1.xpose.msra.mxu0 0.0
    %803 = vmatprep.subr.mxu0 0.0
    %804 = vmatpush1.xpose.msra.mxu0 0.0
    %805 = vmatprep.subr.mxu0 0.0
    %806 = vmatpush1.xpose.msra.mxu0 0.0
    %807 = vmatprep.subr.mxu0 0.0
    %808 = vmatpush1.xpose.msra.mxu0 0.0
    %809 = vmatprep.subr.mxu0 0.0
    %810 = vmatpush1.xpose.msra.mxu0 0.0
    %811 = vmatprep.subr.mxu0 0.0
    %812 = vmatpush1.xpose.msra.mxu0 0.0
    %813 = vmatprep.subr.mxu0 0.0
    %814 = vmatpush1.xpose.msra.mxu0 0.0
    %815 = vmatprep.subr.mxu0 0.0
    %816 = vmatpush1.xpose.msra.mxu0 0.0
    %817 = vmatprep.subr.mxu0 0.0
    %818 = vmatpush1.xpose.msra.mxu0 0.0
    %819 = vmatprep.subr.mxu0 0.0
    %820 = vmatpush1.xpose.msra.mxu0 0.0
    %821 = vmatprep.subr.mxu0 0.0
    %822 = vmatpush1.xpose.msra.mxu0 0.0
    %823 = vmatprep.subr.mxu0 0.0
    %824 = vmatpush1.xpose.msra.mxu0 0.0
    %825 = vmatprep.subr.mxu0 0.0
    %826 = vmatpush1.xpose.msra.mxu0 0.0
    %827 = vmatprep.subr.mxu0 0.0
    %828 = vmatpush1.xpose.msra.mxu0 0.0
    %829 = vmatprep.subr.mxu0 0.0
    %830 = vmatpush1.xpose.msra.mxu0 0.0
    %831 = vmatprep.subr.mxu0 0.0
    %832 = vmatpush1.xpose.msra.mxu0 0.0
    %833 = vmatprep.subr.mxu0 0.0
    %834 = vmatpush1.xpose.msra.mxu0 0.0
    %835 = vmatprep.subr.mxu0 0.0
    %836 = vmatpush1.xpose.msra.mxu0 0.0
    %837 = vmatprep.subr.mxu0 0.0
    %838 = vmatpush1.xpose.msra.mxu0 0.0
    %839 = vmatprep.subr.mxu0 0.0
    %840 = vmatpush1.xpose.msra.mxu0 0.0
    %841 = vmatprep.subr.mxu0 0.0
    %842 = vmatpush1.xpose.msra.mxu0 0.0
    %843 = vmatprep.subr.mxu0 0.0
    %844 = vmatpush1.xpose.msra.mxu0 0.0
    %845 = vmatprep.mubr.f32.mxu0 0.0
    %846 = vmatmul.mubr.f32.gmra.mrb[0].mxu0 %v779
    %v847 = vpop.f32.mrb[0].mxu0
    %v848 = vadd.f32 0.0, %v847
    %v849 = vpop.f32.mrb[0].mxu0
    %850 = vdwg.mxu0
    %v851 = vsel %vm361, %v770, -1e+30
    %v852 = vsel %vm362, %v848, -1e+30
    %v853 = vsel %vm365, %v851, -inf
    %854 = vmax.xlane.f32.xlu0 %v853
    %v855 = vpop.xlane.xlu0 %854
    %v856 = vsel %vm365, %v852, -inf
    %857 = vmax.xlane.f32.xlu0 %v856
    %v858 = vpop.xlane.xlu0 %857
    %v859 = vsub.f32 %v851, %v855
    %v860 = vsub.f32 %v852, %v858
    %v861 = vmul.f32 %v859, 1.442695
    %v862 = vpow.pop %v861
    %v863 = vmul.f32 %v860, 1.442695
    %v864 = vpow.pop %v863
    %v865 = vmul.f32 %v862, %v50
    %v866 = vmul.f32 %v864, %v51
    %v867 = vsel %vm365, %v865, 0.0
    %868 = vadd.xlane.f32.xlu0 %v867
    %v869 = vpop.xlane.xlu0 %868
    %v870 = vsel %vm365, %v866, 0.0
    %871 = vadd.xlane.f32.xlu0 %v870
    %v872 = vpop.xlane.xlu0 %871
    %v873 = vadd.f32 %v869, 1e-20
    %v874 = vadd.f32 %v872, 1e-20
    %v875 = vrcp.pop %v873
    %v876 = vrcp.pop %v874
    %v877 = vmul.f32 %v865, %v875
    %v878 = vmul.f32 %v866, %v876
    %v880 = vsel %vm392, %v877, 0
    %882 = vmatprep.subr.mxu0 0.0
    %883 = vmatpush1.msra.mxu0 %v46
    %884 = vmatprep.subr.mxu0 0.0
    %885 = vmatpush1.msra.mxu0 %v47
    %886 = vmatprep.subr.mxu0 0.0
    %887 = vmatpush1.msra.mxu0 0.0
    %888 = vmatprep.subr.mxu0 0.0
    %889 = vmatpush1.msra.mxu0 0.0
    %890 = vmatprep.subr.mxu0 0.0
    %891 = vmatpush1.msra.mxu0 0.0
    %892 = vmatprep.subr.mxu0 0.0
    %893 = vmatpush1.msra.mxu0 0.0
    %894 = vmatprep.subr.mxu0 0.0
    %895 = vmatpush1.msra.mxu0 0.0
    %896 = vmatprep.subr.mxu0 0.0
    %897 = vmatpush1.msra.mxu0 0.0
    %898 = vmatprep.subr.mxu0 0.0
    %899 = vmatpush1.msra.mxu0 0.0
    %900 = vmatprep.subr.mxu0 0.0
    %901 = vmatpush1.msra.mxu0 0.0
    %902 = vmatprep.subr.mxu0 0.0
    %903 = vmatpush1.msra.mxu0 0.0
    %904 = vmatprep.subr.mxu0 0.0
    %905 = vmatpush1.msra.mxu0 0.0
    %906 = vmatprep.subr.mxu0 0.0
    %907 = vmatpush1.msra.mxu0 0.0
    %908 = vmatprep.subr.mxu0 0.0
    %909 = vmatpush1.msra.mxu0 0.0
    %910 = vmatprep.subr.mxu0 0.0
    %911 = vmatpush1.msra.mxu0 0.0
    %912 = vmatprep.subr.mxu0 0.0
    %913 = vmatpush1.msra.mxu0 0.0
    %914 = vmatprep.subr.mxu0 0.0
    %915 = vmatpush1.msra.mxu0 0.0
    %916 = vmatprep.subr.mxu0 0.0
    %917 = vmatpush1.msra.mxu0 0.0
    %918 = vmatprep.subr.mxu0 0.0
    %919 = vmatpush1.msra.mxu0 0.0
    %920 = vmatprep.subr.mxu0 0.0
    %921 = vmatpush1.msra.mxu0 0.0
    %922 = vmatprep.subr.mxu0 0.0
    %923 = vmatpush1.msra.mxu0 0.0
    %924 = vmatprep.subr.mxu0 0.0
    %925 = vmatpush1.msra.mxu0 0.0
    %926 = vmatprep.subr.mxu0 0.0
    %927 = vmatpush1.msra.mxu0 0.0
    %928 = vmatprep.subr.mxu0 0.0
    %929 = vmatpush1.msra.mxu0 0.0
    %930 = vmatprep.subr.mxu0 0.0
    %931 = vmatpush1.msra.mxu0 0.0
    %932 = vmatprep.subr.mxu0 0.0
    %933 = vmatpush1.msra.mxu0 0.0
    %934 = vmatprep.subr.mxu0 0.0
    %935 = vmatpush1.msra.mxu0 0.0
    %936 = vmatprep.subr.mxu0 0.0
    %937 = vmatpush1.msra.mxu0 0.0
    %938 = vmatprep.subr.mxu0 0.0
    %939 = vmatpush1.msra.mxu0 0.0
    %940 = vmatprep.subr.mxu0 0.0
    %941 = vmatpush1.msra.mxu0 0.0
    %942 = vmatprep.subr.mxu0 0.0
    %943 = vmatpush1.msra.mxu0 0.0
    %944 = vmatprep.subr.mxu0 0.0
    %945 = vmatpush1.msra.mxu0 0.0
    %946 = vmatprep.mubr.f32.mxu0 0.0
    %947 = vmatmul.mubr.f32.gmra.mrb[0].mxu0 %v880
    %v948 = vpop.f32.mrb[0].mxu0
    %v949 = vadd.f32 0.0, %v948
    %v950 = vpop.f32.mrb[0].mxu0
    %951 = vdwg.mxu0
    %v953 = vsel %vm392, %v878, 0
    %955 = vmatprep.subr.mxu0 0.0
    %956 = vmatpush1.msra.mxu0 %v48
    %957 = vmatprep.subr.mxu0 0.0
    %958 = vmatpush1.msra.mxu0 %v49
    %959 = vmatprep.subr.mxu0 0.0
    %960 = vmatpush1.msra.mxu0 0.0
    %961 = vmatprep.subr.mxu0 0.0
    %962 = vmatpush1.msra.mxu0 0.0
    %963 = vmatprep.subr.mxu0 0.0
    %964 = vmatpush1.msra.mxu0 0.0
    %965 = vmatprep.subr.mxu0 0.0
    %966 = vmatpush1.msra.mxu0 0.0
    %967 = vmatprep.subr.mxu0 0.0
    %968 = vmatpush1.msra.mxu0 0.0
    %969 = vmatprep.subr.mxu0 0.0
    %970 = vmatpush1.msra.mxu0 0.0
    %971 = vmatprep.subr.mxu0 0.0
    %972 = vmatpush1.msra.mxu0 0.0
    %973 = vmatprep.subr.mxu0 0.0
    %974 = vmatpush1.msra.mxu0 0.0
    %975 = vmatprep.subr.mxu0 0.0
    %976 = vmatpush1.msra.mxu0 0.0
    %977 = vmatprep.subr.mxu0 0.0
    %978 = vmatpush1.msra.mxu0 0.0
    %979 = vmatprep.subr.mxu0 0.0
    %980 = vmatpush1.msra.mxu0 0.0
    %981 = vmatprep.subr.mxu0 0.0
    %982 = vmatpush1.msra.mxu0 0.0
    %983 = vmatprep.subr.mxu0 0.0
    %984 = vmatpush1.msra.mxu0 0.0
    %985 = vmatprep.subr.mxu0 0.0
    %986 = vmatpush1.msra.mxu0 0.0
    %987 = vmatprep.subr.mxu0 0.0
    %988 = vmatpush1.msra.mxu0 0.0
    %989 = vmatprep.subr.mxu0 0.0
    %990 = vmatpush1.msra.mxu0 0.0
    %991 = vmatprep.subr.mxu0 0.0
    %992 = vmatpush1.msra.mxu0 0.0
    %993 = vmatprep.subr.mxu0 0.0
    %994 = vmatpush1.msra.mxu0 0.0
    %995 = vmatprep.subr.mxu0 0.0
    %996 = vmatpush1.msra.mxu0 0.0
    %997 = vmatprep.subr.mxu0 0.0
    %998 = vmatpush1.msra.mxu0 0.0
    %999 = vmatprep.subr.mxu0 0.0
    %1000 = vmatpush1.msra.mxu0 0.0
    %1001 = vmatprep.subr.mxu0 0.0
    %1002 = vmatpush1.msra.mxu0 0.0
    %1003 = vmatprep.subr.mxu0 0.0
    %1004 = vmatpush1.msra.mxu0 0.0
    %1005 = vmatprep.subr.mxu0 0.0
    %1006 = vmatpush1.msra.mxu0 0.0
    %1007 = vmatprep.subr.mxu0 0.0
    %1008 = vmatpush1.msra.mxu0 0.0
    %1009 = vmatprep.subr.mxu0 0.0
    %1010 = vmatpush1.msra.mxu0 0.0
    %1011 = vmatprep.subr.mxu0 0.0
    %1012 = vmatpush1.msra.mxu0 0.0
    %1013 = vmatprep.subr.mxu0 0.0
    %1014 = vmatpush1.msra.mxu0 0.0
    %1015 = vmatprep.subr.mxu0 0.0
    %1016 = vmatpush1.msra.mxu0 0.0
    %1017 = vmatprep.subr.mxu0 0.0
    %1018 = vmatpush1.msra.mxu0 0.0
    %1019 = vmatprep.mubr.f32.mxu0 0.0
    %1020 = vmatmul.mubr.f32.gmra.mrb[0].mxu0 %v953
    %v1021 = vpop.f32.mrb[0].mxu0
    %v1022 = vadd.f32 0.0, %v1021
    %v1023 = vpop.f32.mrb[0].mxu0
    %1024 = vdwg.mxu0
    %1025 = vrot.lane.b32.xlu0 %v671, 32
    %v1026 = vpop.permute.xlu0 %1025
    %v1030 = vrot.slane %v1022, 7
    %v1031 = vsel %vm545, %v1030, %v949
    %1032 = vrot.lane.b32.xlu0 %v1031, 32
    %v1033 = vpop.permute.xlu0 %1032
    %v1035 = vsel %vm198, %v1026, %v1033
    %v1036 = vld [vmem:[#allocation5] sm:$0xff]
    %v1037 = vld [vmem:[#allocation5 + $0x8] sm:$0xff]
    %v1038 = vld [vmem:[#allocation5 + $0x10] sm:$0xff]
    %v1039 = vld [vmem:[#allocation5 + $0x18] sm:$0xff]
    %v1040 = vld [vmem:[#allocation5 + $0x20] sm:$0xff]
    %v1041 = vld [vmem:[#allocation5 + $0x28] sm:$0xff]
    %v1042 = vld [vmem:[#allocation5 + $0x30] sm:$0xff]
    %v1043 = vld [vmem:[#allocation5 + $0x38] sm:$0xff]
    %v1044 = vld [vmem:[#allocation5 + $0x40] sm:$0xff]
    %v1045 = vld [vmem:[#allocation5 + $0x48] sm:$0xff]
    %v1046 = vld [vmem:[#allocation5 + $0x50] sm:$0xff]
    %v1047 = vld [vmem:[#allocation5 + $0x58] sm:$0xff]
    %v1048 = vld [vmem:[%s3] sm:$0x1]
    %1049 = vrot.lane.b32.xlu0 %v671, 96
    %v1050 = vpop.permute.xlu0 %1049
    %v1052 = vsel %vm567, %v1035, %v1050
    %v1054 = vlaneseq
    %v1055 = vshrl.u32 %v1054, 7
    %v1056 = vsub.s32 0, %v1055
    %v1057 = vrot.slane %v1048, %v1056
    %v1060 = vsel %vm71, %v1052, 0
    %1062 = vmatprep.subr.mxu0 0.0
    %1063 = vmatpush1.msra.mxu0 %v1036
    %1064 = vmatprep.subr.mxu0 0.0
    %1065 = vmatpush1.msra.mxu0 %v1037
    %1066 = vmatprep.subr.mxu0 0.0
    %1067 = vmatpush1.msra.mxu0 %v1038
    %1068 = vmatprep.subr.mxu0 0.0
    %1069 = vmatpush1.msra.mxu0 %v1039
    %1070 = vmatprep.subr.mxu0 0.0
    %1071 = vmatpush1.msra.mxu0 %v1040
    %1072 = vmatprep.subr.mxu0 0.0
    %1073 = vmatpush1.msra.mxu0 %v1041
    %1074 = vmatprep.subr.mxu0 0.0
    %1075 = vmatpush1.msra.mxu0 %v1042
    %1076 = vmatprep.subr.mxu0 0.0
    %1077 = vmatpush1.msra.mxu0 %v1043
    %1078 = vmatprep.subr.mxu0 0.0
    %1079 = vmatpush1.msra.mxu0 %v1044
    %1080 = vmatprep.subr.mxu0 0.0
    %1081 = vmatpush1.msra.mxu0 %v1045
    %1082 = vmatprep.subr.mxu0 0.0
    %1083 = vmatpush1.msra.mxu0 %v1046
    %1084 = vmatprep.subr.mxu0 0.0
    %1085 = vmatpush1.msra.mxu0 %v1047
    %1086 = vmatprep.subr.mxu0 0.0
    %1087 = vmatpush1.msra.mxu0 0.0
    %1088 = vmatprep.subr.mxu0 0.0
    %1089 = vmatpush1.msra.mxu0 0.0
    %1090 = vmatprep.subr.mxu0 0.0
    %1091 = vmatpush1.msra.mxu0 0.0
    %1092 = vmatprep.subr.mxu0 0.0
    %1093 = vmatpush1.msra.mxu0 0.0
    %1094 = vmatprep.subr.mxu0 0.0
    %1095 = vmatpush1.msra.mxu0 0.0
    %1096 = vmatprep.subr.mxu0 0.0
    %1097 = vmatpush1.msra.mxu0 0.0
    %1098 = vmatprep.subr.mxu0 0.0
    %1099 = vmatpush1.msra.mxu0 0.0
    %1100 = vmatprep.subr.mxu0 0.0
    %1101 = vmatpush1.msra.mxu0 0.0
    %1102 = vmatprep.subr.mxu0 0.0
    %1103 = vmatpush1.msra.mxu0 0.0
    %1104 = vmatprep.subr.mxu0 0.0
    %1105 = vmatpush1.msra.mxu0 0.0
    %1106 = vmatprep.subr.mxu0 0.0
    %1107 = vmatpush1.msra.mxu0 0.0
    %1108 = vmatprep.subr.mxu0 0.0
    %1109 = vmatpush1.msra.mxu0 0.0
    %1110 = vmatprep.subr.mxu0 0.0
    %1111 = vmatpush1.msra.mxu0 0.0
    %1112 = vmatprep.subr.mxu0 0.0
    %1113 = vmatpush1.msra.mxu0 0.0
    %1114 = vmatprep.subr.mxu0 0.0
    %1115 = vmatpush1.msra.mxu0 0.0
    %1116 = vmatprep.subr.mxu0 0.0
    %1117 = vmatpush1.msra.mxu0 0.0
    %1118 = vmatprep.subr.mxu0 0.0
    %1119 = vmatpush1.msra.mxu0 0.0
    %1120 = vmatprep.subr.mxu0 0.0
    %1121 = vmatpush1.msra.mxu0 0.0
    %1122 = vmatprep.subr.mxu0 0.0
    %1123 = vmatpush1.msra.mxu0 0.0
    %1124 = vmatprep.subr.mxu0 0.0
    %1125 = vmatpush1.msra.mxu0 0.0
    %1126 = vmatprep.mubr.f32.mxu0 0.0
    %1127 = vmatmul.mubr.f32.gmra.mrb[0].mxu0 %v1060
    %v1128 = vpop.f32.mrb[0].mxu0
    %v1129 = vadd.f32 %v1057, %v1128
    %v1130 = vpop.f32.mrb[0].mxu0
    %1131 = vdwg.mxu0
    %v1132 = vxor.u32 %v1129, 2147483648
    %v1133 = vmul.f32 %v1132, 1.442695
    %v1134 = vpow.pop %v1133
    %v1135 = vadd.f32 %v1134, 1.0
    %v1136 = vrcp.pop %v1135
    %v1137 = vmul.f32 1.0, %v1136
    %v1138 = vtanh.pop %v1129
    %v1139 = vmul.f32 %v1137, %v665
    %1141 = vrot.lane.b32.xlu0 %v1138, 64
    %v1142 = vpop.permute.xlu0 %1141
    %v1144 = vmul.f32 %v1137, %v1142
    %1146 = vrot.lane.b32.xlu0 %v1144, 32
    %v1147 = vpop.permute.xlu0 %1146
    %v1149 = vadd.f32 %v1139, %v1147
    %v1150 = vtanh.pop %v1149
    %1152 = vrot.lane.b32.xlu0 %v1150, 64
    %v1153 = vpop.permute.xlu0 %1152
    %v1155 = vmul.f32 %v1137, %v1153
    %v1158 = vunpack.c.l.s4 1966171168
    %v1159 = vunpack.c.0.s8 %v1158
    %v1160 = vlaneseq
    %v1161 = vshrl.u32 %v1160, 7
    %v1162 = vsub.s32 %v1159, %v1161
    %v1163 = vrot.slane %v1155, %v1162
    %v1164 = vcombine.high %v1163, %v1163
    %v1166 = vunpack.c.l.s4 1966171168
    %v1167 = vunpack.c.0.s8 %v1166
    %v1168 = vlaneseq
    %v1169 = vshrl.u32 %v1168, 7
    %v1170 = vsub.s32 %v1167, %v1169
    %v1171 = vrot.slane %v1163, %v1170
    %v1173 = vunpack.c.l.s4 1966171168
    %v1174 = vunpack.c.0.s8 %v1173
    %v1175 = vlaneseq
    %v1176 = vshrl.u32 %v1175, 7
    %v1177 = vsub.s32 %v1174, %v1176
    %v1178 = vrot.slane %v1164, %v1177
    %v1179 = vlaneseq
    %v1180 = vshrl.u32 %v1179, 7
    %v1181 = vsub.s32 0, %v1180
    %v1182 = vrot.slane %v1171, %v1181
    %1183 = vrot.lane.b32.xlu0 %v1182, 32
    %v1184 = vpop.permute.xlu0 %1183
    %v1185 = vsel %vm198, %v1184, 0
    %1187 = vmatprep.subr.mxu0 0.0
    %1188 = vmatpush1.xpose.msra.mxu0 %v202
    %1189 = vmatprep.subr.mxu0 0.0
    %1190 = vmatpush1.xpose.msra.mxu0 %v205
    %1191 = vmatprep.subr.mxu0 0.0
    %1192 = vmatpush1.xpose.msra.mxu0 0.0
    %1193 = vmatprep.subr.mxu0 0.0
    %1194 = vmatpush1.xpose.msra.mxu0 0.0
    %1195 = vmatprep.subr.mxu0 0.0
    %1196 = vmatpush1.xpose.msra.mxu0 0.0
    %1197 = vmatprep.subr.mxu0 0.0
    %1198 = vmatpush1.xpose.msra.mxu0 0.0
    %1199 = vmatprep.subr.mxu0 0.0
    %1200 = vmatpush1.xpose.msra.mxu0 0.0
    %1201 = vmatprep.subr.mxu0 0.0
    %1202 = vmatpush1.xpose.msra.mxu0 0.0
    %1203 = vmatprep.subr.mxu0 0.0
    %1204 = vmatpush1.xpose.msra.mxu0 0.0
    %1205 = vmatprep.subr.mxu0 0.0
    %1206 = vmatpush1.xpose.msra.mxu0 0.0
    %1207 = vmatprep.subr.mxu0 0.0
    %1208 = vmatpush1.xpose.msra.mxu0 0.0
    %1209 = vmatprep.subr.mxu0 0.0
    %1210 = vmatpush1.xpose.msra.mxu0 0.0
    %1211 = vmatprep.subr.mxu0 0.0
    %1212 = vmatpush1.xpose.msra.mxu0 0.0
    %1213 = vmatprep.subr.mxu0 0.0
    %1214 = vmatpush1.xpose.msra.mxu0 0.0
    %1215 = vmatprep.subr.mxu0 0.0
    %1216 = vmatpush1.xpose.msra.mxu0 0.0
    %1217 = vmatprep.subr.mxu0 0.0
    %1218 = vmatpush1.xpose.msra.mxu0 0.0
    %1219 = vmatprep.subr.mxu0 0.0
    %1220 = vmatpush1.xpose.msra.mxu0 0.0
    %1221 = vmatprep.subr.mxu0 0.0
    %1222 = vmatpush1.xpose.msra.mxu0 0.0
    %1223 = vmatprep.subr.mxu0 0.0
    %1224 = vmatpush1.xpose.msra.mxu0 0.0
    %1225 = vmatprep.subr.mxu0 0.0
    %1226 = vmatpush1.xpose.msra.mxu0 0.0
    %1227 = vmatprep.subr.mxu0 0.0
    %1228 = vmatpush1.xpose.msra.mxu0 0.0
    %1229 = vmatprep.subr.mxu0 0.0
    %1230 = vmatpush1.xpose.msra.mxu0 0.0
    %1231 = vmatprep.subr.mxu0 0.0
    %1232 = vmatpush1.xpose.msra.mxu0 0.0
    %1233 = vmatprep.subr.mxu0 0.0
    %1234 = vmatpush1.xpose.msra.mxu0 0.0
    %1235 = vmatprep.subr.mxu0 0.0
    %1236 = vmatpush1.xpose.msra.mxu0 0.0
    %1237 = vmatprep.subr.mxu0 0.0
    %1238 = vmatpush1.xpose.msra.mxu0 0.0
    %1239 = vmatprep.subr.mxu0 0.0
    %1240 = vmatpush1.xpose.msra.mxu0 0.0
    %1241 = vmatprep.subr.mxu0 0.0
    %1242 = vmatpush1.xpose.msra.mxu0 0.0
    %1243 = vmatprep.subr.mxu0 0.0
    %1244 = vmatpush1.xpose.msra.mxu0 0.0
    %1245 = vmatprep.subr.mxu0 0.0
    %1246 = vmatpush1.xpose.msra.mxu0 0.0
    %1247 = vmatprep.subr.mxu0 0.0
    %1248 = vmatpush1.xpose.msra.mxu0 0.0
    %1249 = vmatprep.subr.mxu0 0.0
    %1250 = vmatpush1.xpose.msra.mxu0 0.0
    %1251 = vmatprep.mubr.f32.mxu0 0.0
    %1252 = vmatmul.mubr.f32.gmra.mrb[0].mxu0 %v1185
    %v1253 = vpop.f32.mrb[0].mxu0
    %v1254 = vadd.f32 0.0, %v1253
    %v1255 = vpop.f32.mrb[0].mxu0
    %1256 = vdwg.mxu0
    %v1257 = vlaneseq
    %v1258 = vshrl.u32 %v1257, 7
    %v1259 = vsub.s32 0, %v1258
    %v1260 = vrot.slane %v1178, %v1259
    %1261 = vrot.lane.b32.xlu0 %v1260, 32
    %v1262 = vpop.permute.xlu0 %1261
    %v1263 = vsel %vm198, %v1262, 0
    %1265 = vmatprep.subr.mxu0 0.0
    %1266 = vmatpush1.xpose.msra.mxu0 %v286
    %1267 = vmatprep.subr.mxu0 0.0
    %1268 = vmatpush1.xpose.msra.mxu0 %v289
    %1269 = vmatprep.subr.mxu0 0.0
    %1270 = vmatpush1.xpose.msra.mxu0 0.0
    %1271 = vmatprep.subr.mxu0 0.0
    %1272 = vmatpush1.xpose.msra.mxu0 0.0
    %1273 = vmatprep.subr.mxu0 0.0
    %1274 = vmatpush1.xpose.msra.mxu0 0.0
    %1275 = vmatprep.subr.mxu0 0.0
    %1276 = vmatpush1.xpose.msra.mxu0 0.0
    %1277 = vmatprep.subr.mxu0 0.0
    %1278 = vmatpush1.xpose.msra.mxu0 0.0
    %1279 = vmatprep.subr.mxu0 0.0
    %1280 = vmatpush1.xpose.msra.mxu0 0.0
    %1281 = vmatprep.subr.mxu0 0.0
    %1282 = vmatpush1.xpose.msra.mxu0 0.0
    %1283 = vmatprep.subr.mxu0 0.0
    %1284 = vmatpush1.xpose.msra.mxu0 0.0
    %1285 = vmatprep.subr.mxu0 0.0
    %1286 = vmatpush1.xpose.msra.mxu0 0.0
    %1287 = vmatprep.subr.mxu0 0.0
    %1288 = vmatpush1.xpose.msra.mxu0 0.0
    %1289 = vmatprep.subr.mxu0 0.0
    %1290 = vmatpush1.xpose.msra.mxu0 0.0
    %1291 = vmatprep.subr.mxu0 0.0
    %1292 = vmatpush1.xpose.msra.mxu0 0.0
    %1293 = vmatprep.subr.mxu0 0.0
    %1294 = vmatpush1.xpose.msra.mxu0 0.0
    %1295 = vmatprep.subr.mxu0 0.0
    %1296 = vmatpush1.xpose.msra.mxu0 0.0
    %1297 = vmatprep.subr.mxu0 0.0
    %1298 = vmatpush1.xpose.msra.mxu0 0.0
    %1299 = vmatprep.subr.mxu0 0.0
    %1300 = vmatpush1.xpose.msra.mxu0 0.0
    %1301 = vmatprep.subr.mxu0 0.0
    %1302 = vmatpush1.xpose.msra.mxu0 0.0
    %1303 = vmatprep.subr.mxu0 0.0
    %1304 = vmatpush1.xpose.msra.mxu0 0.0
    %1305 = vmatprep.subr.mxu0 0.0
    %1306 = vmatpush1.xpose.msra.mxu0 0.0
    %1307 = vmatprep.subr.mxu0 0.0
    %1308 = vmatpush1.xpose.msra.mxu0 0.0
    %1309 = vmatprep.subr.mxu0 0.0
    %1310 = vmatpush1.xpose.msra.mxu0 0.0
    %1311 = vmatprep.subr.mxu0 0.0
    %1312 = vmatpush1.xpose.msra.mxu0 0.0
    %1313 = vmatprep.subr.mxu0 0.0
    %1314 = vmatpush1.xpose.msra.mxu0 0.0
    %1315 = vmatprep.subr.mxu0 0.0
    %1316 = vmatpush1.xpose.msra.mxu0 0.0
    %1317 = vmatprep.subr.mxu0 0.0
    %1318 = vmatpush1.xpose.msra.mxu0 0.0
    %1319 = vmatprep.subr.mxu0 0.0
    %1320 = vmatpush1.xpose.msra.mxu0 0.0
    %1321 = vmatprep.subr.mxu0 0.0
    %1322 = vmatpush1.xpose.msra.mxu0 0.0
    %1323 = vmatprep.subr.mxu0 0.0
    %1324 = vmatpush1.xpose.msra.mxu0 0.0
    %1325 = vmatprep.subr.mxu0 0.0
    %1326 = vmatpush1.xpose.msra.mxu0 0.0
    %1327 = vmatprep.subr.mxu0 0.0
    %1328 = vmatpush1.xpose.msra.mxu0 0.0
    %1329 = vmatprep.mubr.f32.mxu0 0.0
    %1330 = vmatmul.mubr.f32.gmra.mrb[0].mxu0 %v1263
    %v1331 = vpop.f32.mrb[0].mxu0
    %v1332 = vadd.f32 0.0, %v1331
    %v1333 = vpop.f32.mrb[0].mxu0
    %1334 = vdwg.mxu0
    %v1335 = vsel %vm361, %v1254, -1e+30
    %v1336 = vsel %vm362, %v1332, -1e+30
    %v1337 = vsel %vm365, %v1335, -inf
    %1338 = vmax.xlane.f32.xlu0 %v1337
    %v1339 = vpop.xlane.xlu0 %1338
    %v1340 = vsel %vm365, %v1336, -inf
    %1341 = vmax.xlane.f32.xlu0 %v1340
    %v1342 = vpop.xlane.xlu0 %1341
    %v1343 = vsub.f32 %v1335, %v1339
    %v1344 = vsub.f32 %v1336, %v1342
    %v1345 = vmul.f32 %v1343, 1.442695
    %v1346 = vpow.pop %v1345
    %v1347 = vmul.f32 %v1344, 1.442695
    %v1348 = vpow.pop %v1347
    %v1349 = vmul.f32 %v1346, %v50
    %v1350 = vmul.f32 %v1348, %v51
    %v1351 = vsel %vm365, %v1349, 0.0
    %1352 = vadd.xlane.f32.xlu0 %v1351
    %v1353 = vpop.xlane.xlu0 %1352
    %v1354 = vsel %vm365, %v1350, 0.0
    %1355 = vadd.xlane.f32.xlu0 %v1354
    %v1356 = vpop.xlane.xlu0 %1355
    %v1357 = vadd.f32 %v1353, 1e-20
    %v1358 = vadd.f32 %v1356, 1e-20
    %v1359 = vrcp.pop %v1357
    %v1360 = vrcp.pop %v1358
    %v1361 = vmul.f32 %v1349, %v1359
    %v1362 = vmul.f32 %v1350, %v1360
    %v1364 = vsel %vm392, %v1361, 0
    %1366 = vmatprep.subr.mxu0 0.0
    %1367 = vmatpush1.msra.mxu0 %v46
    %1368 = vmatprep.subr.mxu0 0.0
    %1369 = vmatpush1.msra.mxu0 %v47
    %1370 = vmatprep.subr.mxu0 0.0
    %1371 = vmatpush1.msra.mxu0 0.0
    %1372 = vmatprep.subr.mxu0 0.0
    %1373 = vmatpush1.msra.mxu0 0.0
    %1374 = vmatprep.subr.mxu0 0.0
    %1375 = vmatpush1.msra.mxu0 0.0
    %1376 = vmatprep.subr.mxu0 0.0
    %1377 = vmatpush1.msra.mxu0 0.0
    %1378 = vmatprep.subr.mxu0 0.0
    %1379 = vmatpush1.msra.mxu0 0.0
    %1380 = vmatprep.subr.mxu0 0.0
    %1381 = vmatpush1.msra.mxu0 0.0
    %1382 = vmatprep.subr.mxu0 0.0
    %1383 = vmatpush1.msra.mxu0 0.0
    %1384 = vmatprep.subr.mxu0 0.0
    %1385 = vmatpush1.msra.mxu0 0.0
    %1386 = vmatprep.subr.mxu0 0.0
    %1387 = vmatpush1.msra.mxu0 0.0
    %1388 = vmatprep.subr.mxu0 0.0
    %1389 = vmatpush1.msra.mxu0 0.0
    %1390 = vmatprep.subr.mxu0 0.0
    %1391 = vmatpush1.msra.mxu0 0.0
    %1392 = vmatprep.subr.mxu0 0.0
    %1393 = vmatpush1.msra.mxu0 0.0
    %1394 = vmatprep.subr.mxu0 0.0
    %1395 = vmatpush1.msra.mxu0 0.0
    %1396 = vmatprep.subr.mxu0 0.0
    %1397 = vmatpush1.msra.mxu0 0.0
    %1398 = vmatprep.subr.mxu0 0.0
    %1399 = vmatpush1.msra.mxu0 0.0
    %1400 = vmatprep.subr.mxu0 0.0
    %1401 = vmatpush1.msra.mxu0 0.0
    %1402 = vmatprep.subr.mxu0 0.0
    %1403 = vmatpush1.msra.mxu0 0.0
    %1404 = vmatprep.subr.mxu0 0.0
    %1405 = vmatpush1.msra.mxu0 0.0
    %1406 = vmatprep.subr.mxu0 0.0
    %1407 = vmatpush1.msra.mxu0 0.0
    %1408 = vmatprep.subr.mxu0 0.0
    %1409 = vmatpush1.msra.mxu0 0.0
    %1410 = vmatprep.subr.mxu0 0.0
    %1411 = vmatpush1.msra.mxu0 0.0
    %1412 = vmatprep.subr.mxu0 0.0
    %1413 = vmatpush1.msra.mxu0 0.0
    %1414 = vmatprep.subr.mxu0 0.0
    %1415 = vmatpush1.msra.mxu0 0.0
    %1416 = vmatprep.subr.mxu0 0.0
    %1417 = vmatpush1.msra.mxu0 0.0
    %1418 = vmatprep.subr.mxu0 0.0
    %1419 = vmatpush1.msra.mxu0 0.0
    %1420 = vmatprep.subr.mxu0 0.0
    %1421 = vmatpush1.msra.mxu0 0.0
    %1422 = vmatprep.subr.mxu0 0.0
    %1423 = vmatpush1.msra.mxu0 0.0
    %1424 = vmatprep.subr.mxu0 0.0
    %1425 = vmatpush1.msra.mxu0 0.0
    %1426 = vmatprep.subr.mxu0 0.0
    %1427 = vmatpush1.msra.mxu0 0.0
    %1428 = vmatprep.subr.mxu0 0.0
    %1429 = vmatpush1.msra.mxu0 0.0
    %1430 = vmatprep.mubr.f32.mxu0 0.0
    %1431 = vmatmul.mubr.f32.gmra.mrb[0].mxu0 %v1364
    %v1432 = vpop.f32.mrb[0].mxu0
    %v1433 = vadd.f32 0.0, %v1432
    %v1434 = vpop.f32.mrb[0].mxu0
    %1435 = vdwg.mxu0
    %v1437 = vsel %vm392, %v1362, 0
    %1439 = vmatprep.subr.mxu0 0.0
    %1440 = vmatpush1.msra.mxu0 %v48
    %1441 = vmatprep.subr.mxu0 0.0
    %1442 = vmatpush1.msra.mxu0 %v49
    %1443 = vmatprep.subr.mxu0 0.0
    %1444 = vmatpush1.msra.mxu0 0.0
    %1445 = vmatprep.subr.mxu0 0.0
    %1446 = vmatpush1.msra.mxu0 0.0
    %1447 = vmatprep.subr.mxu0 0.0
    %1448 = vmatpush1.msra.mxu0 0.0
    %1449 = vmatprep.subr.mxu0 0.0
    %1450 = vmatpush1.msra.mxu0 0.0
    %1451 = vmatprep.subr.mxu0 0.0
    %1452 = vmatpush1.msra.mxu0 0.0
    %1453 = vmatprep.subr.mxu0 0.0
    %1454 = vmatpush1.msra.mxu0 0.0
    %1455 = vmatprep.subr.mxu0 0.0
    %1456 = vmatpush1.msra.mxu0 0.0
    %1457 = vmatprep.subr.mxu0 0.0
    %1458 = vmatpush1.msra.mxu0 0.0
    %1459 = vmatprep.subr.mxu0 0.0
    %1460 = vmatpush1.msra.mxu0 0.0
    %1461 = vmatprep.subr.mxu0 0.0
    %1462 = vmatpush1.msra.mxu0 0.0
    %1463 = vmatprep.subr.mxu0 0.0
    %1464 = vmatpush1.msra.mxu0 0.0
    %1465 = vmatprep.subr.mxu0 0.0
    %1466 = vmatpush1.msra.mxu0 0.0
    %1467 = vmatprep.subr.mxu0 0.0
    %1468 = vmatpush1.msra.mxu0 0.0
    %1469 = vmatprep.subr.mxu0 0.0
    %1470 = vmatpush1.msra.mxu0 0.0
    %1471 = vmatprep.subr.mxu0 0.0
    %1472 = vmatpush1.msra.mxu0 0.0
    %1473 = vmatprep.subr.mxu0 0.0
    %1474 = vmatpush1.msra.mxu0 0.0
    %1475 = vmatprep.subr.mxu0 0.0
    %1476 = vmatpush1.msra.mxu0 0.0
    %1477 = vmatprep.subr.mxu0 0.0
    %1478 = vmatpush1.msra.mxu0 0.0
    %1479 = vmatprep.subr.mxu0 0.0
    %1480 = vmatpush1.msra.mxu0 0.0
    %1481 = vmatprep.subr.mxu0 0.0
    %1482 = vmatpush1.msra.mxu0 0.0
    %1483 = vmatprep.subr.mxu0 0.0
    %1484 = vmatpush1.msra.mxu0 0.0
    %1485 = vmatprep.subr.mxu0 0.0
    %1486 = vmatpush1.msra.mxu0 0.0
    %1487 = vmatprep.subr.mxu0 0.0
    %1488 = vmatpush1.msra.mxu0 0.0
    %1489 = vmatprep.subr.mxu0 0.0
    %1490 = vmatpush1.msra.mxu0 0.0
    %1491 = vmatprep.subr.mxu0 0.0
    %1492 = vmatpush1.msra.mxu0 0.0
    %1493 = vmatprep.subr.mxu0 0.0
    %1494 = vmatpush1.msra.mxu0 0.0
    %1495 = vmatprep.subr.mxu0 0.0
    %1496 = vmatpush1.msra.mxu0 0.0
    %1497 = vmatprep.subr.mxu0 0.0
    %1498 = vmatpush1.msra.mxu0 0.0
    %1499 = vmatprep.subr.mxu0 0.0
    %1500 = vmatpush1.msra.mxu0 0.0
    %1501 = vmatprep.subr.mxu0 0.0
    %1502 = vmatpush1.msra.mxu0 0.0
    %1503 = vmatprep.mubr.f32.mxu0 0.0
    %1504 = vmatmul.mubr.f32.gmra.mrb[0].mxu0 %v1437
    %v1505 = vpop.f32.mrb[0].mxu0
    %v1506 = vadd.f32 0.0, %v1505
    %v1507 = vpop.f32.mrb[0].mxu0
    %1508 = vdwg.mxu0
    %1509 = vrot.lane.b32.xlu0 %v1155, 32
    %v1510 = vpop.permute.xlu0 %1509
    %v1514 = vrot.slane %v1506, 7
    %v1515 = vsel %vm545, %v1514, %v1433
    %1516 = vrot.lane.b32.xlu0 %v1515, 32
    %v1517 = vpop.permute.xlu0 %1516
    %v1519 = vsel %vm198, %v1510, %v1517
    %vm1520 = vcmask 517120
    %1521 = vst.msk [vmem:[#allocation7] sm:$0x3] %vm1520, %v1519
    // Predicated region
    $region26: #{a_call__.1} parent=1 // pred_check
      _
    $region27: #{a_call__.1} parent=1 // pred_check_branch
      %1523 = sbr.rel (0) target = $region29
    $region28: #{a_call__.1} parent=1 // pred_region
      %s1525 = ssub.s32 32, 32
      %1526 = vsyncadd [#allocation4], %s1525
      %s1528 = sshll.u32 [#allocation7], 4
      %s1529 = int_to_ptr.vmem [resolvable:$true] %s1528
      %1531 = dma.vmem_to_hbm [thread:$0]  %s1529, 32, %s4, [#allocation4]
    $region29: #{a_call__.1} parent=1 // pred_fallthru
      _
    // Predicated region
    $region30: #{a_call__.1} parent=1 // pred_check
      _
    $region31: #{a_call__.1} parent=1 // pred_check_branch
      %1533 = sbr.rel (0) target = $region33
    $region32: #{a_call__.1} parent=1 // pred_region
      %1534 = dma.done [#allocation4], 32
    $region33: #{a_call__.1} parent=1 // pred_fallthru
      _
    %1535 = vsyncpa [#allocation3], 1
    %1536 = vsyncpa [#allocation6], 1
    %1537 = vsyncpa [#allocation4], 1

</llo_original>
